<compile_context>
chip_gen: v7x
topology: tpu7x:2x2x1
jax: 0.10.0
libtpu: 0.0.40
codegen_flags: <defaults>
</compile_context>

<pallas_src>
import jax
import jax.numpy as jnp
from jax.experimental import pallas as pl
from jax.experimental.pallas import tpu as pltpu


def restruct_fused_kernel(w_ref, x_ref, o_ref, xpad_ref):
    """Fused PixelShuffle(2) + 3x3 conv (pad=1, 1 output channel), one image per step.

    w_ref   : (C_ps * 9,) f32 in SMEM          -- flattened OIHW conv weight (O=1)
    x_ref   : (1, C, H, W) in VMEM             -- ORIGINAL (pre-shuffle) input block
    o_ref   : (1, 4, H, W) in VMEM             -- 4 sub-pixel phase planes (py*2 + px)
    xpad_ref: (C, H+2, W+2) f32 VMEM scratch   -- zero-padded copy of the input block
    """
    C, H, W = x_ref.shape[1], x_ref.shape[2], x_ref.shape[3]
    C_ps = C // 4  # conv input channels after PixelShuffle(2)

    # Zero-pad the original input once per image.  Full re-zero every step keeps the
    # kernel correct when the parallel grid axis is split across TensorCores (each core
    # has its own scratch).  Both writes are plain static-slice ref stores.
    xpad_ref[...] = jnp.zeros_like(xpad_ref)
    xpad_ref[:, pl.ds(1, H), pl.ds(1, W)] = x_ref[0].astype(jnp.float32)

    # Sub-pixel decomposition tables.  For output phase p (0/1) along one spatial axis,
    # the 3 conv taps k map to (source sub-pixel phase a, source shift d, tap index k):
    #   shuffled coord 2*i + p + k - 1 == 2*(i + d) + a
    TAPS = (
        ((1, -1, 0), (0, 0, 1), (1, 0, 2)),   # output phase 0
        ((0, 0, 0), (1, 0, 1), (0, 1, 2)),    # output phase 1
    )

    # De-duplicated shifted windows of the padded input:
    #   window(ch, di, dj)[i, j] == x[ch, i + di, j + dj]  (zero outside the image)
    win_cache = {}

    def window(ch, di, dj):
        key = (ch, di, dj)
        if key not in win_cache:
            win_cache[key] = xpad_ref[ch, pl.ds(1 + di, H), pl.ds(1 + dj, W)]
        return win_cache[key]

    # NOTE: C_ps is tiny (4) so a static Python unroll is fine; for larger C_ps switch
    # the channel loop to lax.fori_loop(..., unroll=True).
    for py in range(2):
        for px in range(2):
            acc = jnp.zeros((H, W), jnp.float32)
            for (a, di, ky) in TAPS[py]:
                for (b, dj, kx) in TAPS[px]:
                    for c in range(C_ps):
                        ch = c * 4 + a * 2 + b          # channel holding sub-pixel (a, b)
                        wv = w_ref[c * 9 + ky * 3 + kx]  # scalar weight from SMEM
                        acc = acc + window(ch, di, dj) * wv
            o_ref[0, py * 2 + px] = acc.astype(o_ref.dtype)


def restruct_forward(x, weight):
    """x: (N, C, H, W) NCHW; weight: (1, C//4, 3, 3) OIHW.  Returns (N, 1, 2H, 2W)."""
    N, C, H, W = x.shape
    C_ps = C // 4
    assert weight.shape == (1, C_ps, 3, 3)
    Hs, Ws = 2 * H, 2 * W

    w_flat = weight.reshape(-1).astype(jnp.float32)  # (C_ps * 9,)

    flops = 2 * N * C_ps * 9 * Hs * Ws
    bytes_accessed = (x.size * x.dtype.itemsize
                      + w_flat.size * 4
                      + N * 4 * H * W * x.dtype.itemsize)

    # TODO(synk): for large Hs/Ws, tile the H axis in row blocks with a 1-row halo and
    # set pltpu.CompilerParams(vmem_limit_bytes=...) (v7x has only 64 MiB VMEM).
    phases = pl.pallas_call(
        restruct_fused_kernel,
        out_shape=jax.ShapeDtypeStruct((N, 4, H, W), x.dtype),
        grid=(N,),
        in_specs=[
            pl.BlockSpec(memory_space=pltpu.MemorySpace.SMEM),          # conv weights
            pl.BlockSpec((1, C, H, W), lambda n: (n, 0, 0, 0)),         # original x
        ],
        out_specs=pl.BlockSpec((1, 4, H, W), lambda n: (n, 0, 0, 0)),
        scratch_shapes=[pltpu.VMEM((C, H + 2, W + 2), jnp.float32)],
        compiler_params=pltpu.CompilerParams(dimension_semantics=("parallel",)),
        cost_estimate=pl.CostEstimate(flops=flops, transcendentals=0,
                                      bytes_accessed=bytes_accessed),
    )(w_flat, x)

    # Pure layout plumbing: interleave the 4 sub-pixel phase planes back to NCHW.
    out = (phases.reshape(N, 2, 2, H, W)        # (n, py, px, i, j)
                 .transpose(0, 3, 1, 4, 2)      # (n, i, py, j, px)
                 .reshape(N, 1, Hs, Ws))
    return out


# ----------------------------- pure-JAX reference -----------------------------

def pixel_shuffle_nchw(x, r):
    """PyTorch-semantics PixelShuffle on NCHW."""
    N, C, H, W = x.shape
    Co = C // (r * r)
    x = x.reshape(N, Co, r, r, H, W)
    x = x.transpose(0, 1, 4, 2, 5, 3)
    return x.reshape(N, Co, H * r, W * r)


def restruct_reference(x, weight):
    """Reference: PixelShuffle(2) then 3x3 conv (pad=1, no bias)."""
    xs = pixel_shuffle_nchw(x, 2)
    return jax.lax.conv_general_dilated(
        xs, weight,
        window_strides=(1, 1),
        padding=((1, 1), (1, 1)),
        dimension_numbers=("NCHW", "OIHW", "NCHW"),
    )


if __name__ == "__main__":
    # Module config: restruct(in_channel=128) -> Conv2d(128//32 = 4, 1, 3, 1, 1, bias=False).
    # PixelShuffle(2) divides channels by 4, so the forward input must have 4*4 = 16 channels.
    in_channel = 128
    C_conv = in_channel // 32                   # conv input channels = 4
    N, C, H, W = 2, 4 * C_conv, 16, 16

    key = jax.random.PRNGKey(0)
    kx, kw = jax.random.split(key)
    x = jax.random.normal(kx, (N, C, H, W), dtype=jnp.float32)

    fan_in = C_conv * 3 * 3
    weight = jax.random.normal(kw, (1, C_conv, 3, 3), dtype=jnp.float32) * (2.0 / fan_in) ** 0.5

    fwd = jax.jit(restruct_forward)
    out = jax.block_until_ready(fwd(x, weight))

    ref = restruct_reference(x, weight)
    assert out.shape == (N, 1, 2 * H, 2 * W), out.shape
    assert jnp.allclose(out, ref, atol=1e-5, rtol=1e-5), "mismatch vs reference conv"

    print("KERNEL_OK")
</pallas_src>

<mosaic_0001>
module attributes {stable_mosaic.version = 11 : i64} {
  func.func @restruct_fused_kernel(%arg0: i32, %arg1: memref<36xf32, #tpu.memory_space<smem>>, %arg2: memref<1x16x16x16xf32, #tpu.memory_space<vmem>>, %arg3: memref<1x4x16x16xf32, #tpu.memory_space<vmem>>, %arg4: memref<16x18x18xf32, #tpu.memory_space<vmem>>) attributes {dimension_semantics = [#tpu.dimension_semantics<parallel>], iteration_bounds = array<i64: 2>, scalar_prefetch = 0 : i64, scratch_operands = 1 : i64, tpu.core_type = #tpu.core_type<tc>, window_params = [{transform_indices = @transform_0, window_bounds = array<i64: 36>}, {transform_indices = @transform_1, window_bounds = array<i64: 1, 16, 16, 16>}, {transform_indices = @transform_2, window_bounds = array<i64: 1, 4, 16, 16>}]} {
    %cst = arith.constant 0.000000e+00 : f32
    %0 = vector.broadcast %cst : f32 to vector<16x18x18xf32>
    %c0 = arith.constant 0 : index
    %c0_0 = arith.constant 0 : index
    %c0_1 = arith.constant 0 : index
    %1 = vector.load %arg4[%c0, %c0_0, %c0_1] : memref<16x18x18xf32, #tpu.memory_space<vmem>>, vector<16x18x18xf32>
    tpu.vector_store %arg4[%c0, %c0_0, %c0_1], %0 {strides = array<i32>} : memref<16x18x18xf32, #tpu.memory_space<vmem>>, vector<16x18x18xf32>,
    %c0_2 = arith.constant 0 : index
    %c0_3 = arith.constant 0 : index
    %c0_4 = arith.constant 0 : index
    %c0_5 = arith.constant 0 : index
    %2 = vector.load %arg2[%c0_2, %c0_3, %c0_4, %c0_5] : memref<1x16x16x16xf32, #tpu.memory_space<vmem>>, vector<1x16x16x16xf32>
    %3 = vector.shape_cast %2 : vector<1x16x16x16xf32> to vector<16x16x16xf32>
    %c0_6 = arith.constant 0 : index
    %c1 = arith.constant 1 : index
    %c1_7 = arith.constant 1 : index
    %4 = vector.load %arg4[%c0_6, %c1, %c1_7] : memref<16x18x18xf32, #tpu.memory_space<vmem>>, vector<16x16x16xf32>
    tpu.vector_store %arg4[%c0_6, %c1, %c1_7], %3 {strides = array<i32>} : memref<16x18x18xf32, #tpu.memory_space<vmem>>, vector<16x16x16xf32>,
    %cst_8 = arith.constant 0.000000e+00 : f32
    %5 = vector.broadcast %cst_8 : f32 to vector<16x16xf32>
    %c0_9 = arith.constant 0 : index
    %6 = memref.load %arg1[%c0_9] : memref<36xf32, #tpu.memory_space<smem>>
    %c3 = arith.constant 3 : index
    %c0_10 = arith.constant 0 : index
    %c0_11 = arith.constant 0 : index
    %7 = vector.load %arg4[%c3, %c0_10, %c0_11] : memref<16x18x18xf32, #tpu.memory_space<vmem>>, vector<1x16x16xf32>
    %8 = vector.shape_cast %7 : vector<1x16x16xf32> to vector<16x16xf32>
    %9 = vector.broadcast %6 : f32 to vector<16x16xf32>
    %10 = arith.mulf %8, %9 : vector<16x16xf32>
    %11 = arith.addf %5, %10 : vector<16x16xf32>
    %c9 = arith.constant 9 : index
    %12 = memref.load %arg1[%c9] : memref<36xf32, #tpu.memory_space<smem>>
    %c7 = arith.constant 7 : index
    %c0_12 = arith.constant 0 : index
    %c0_13 = arith.constant 0 : index
    %13 = vector.load %arg4[%c7, %c0_12, %c0_13] : memref<16x18x18xf32, #tpu.memory_space<vmem>>, vector<1x16x16xf32>
    %14 = vector.shape_cast %13 : vector<1x16x16xf32> to vector<16x16xf32>
    %15 = vector.broadcast %12 : f32 to vector<16x16xf32>
    %16 = arith.mulf %14, %15 : vector<16x16xf32>
    %17 = arith.addf %11, %16 : vector<16x16xf32>
    %c18 = arith.constant 18 : index
    %18 = memref.load %arg1[%c18] : memref<36xf32, #tpu.memory_space<smem>>
    %c11 = arith.constant 11 : index
    %c0_14 = arith.constant 0 : index
    %c0_15 = arith.constant 0 : index
    %19 = vector.load %arg4[%c11, %c0_14, %c0_15] : memref<16x18x18xf32, #tpu.memory_space<vmem>>, vector<1x16x16xf32>
    %20 = vector.shape_cast %19 : vector<1x16x16xf32> to vector<16x16xf32>
    %21 = vector.broadcast %18 : f32 to vector<16x16xf32>
    %22 = arith.mulf %20, %21 : vector<16x16xf32>
    %23 = arith.addf %17, %22 : vector<16x16xf32>
    %c27 = arith.constant 27 : index
    %24 = memref.load %arg1[%c27] : memref<36xf32, #tpu.memory_space<smem>>
    %c15 = arith.constant 15 : index
    %c0_16 = arith.constant 0 : index
    %c0_17 = arith.constant 0 : index
    %25 = vector.load %arg4[%c15, %c0_16, %c0_17] : memref<16x18x18xf32, #tpu.memory_space<vmem>>, vector<1x16x16xf32>
    %26 = vector.shape_cast %25 : vector<1x16x16xf32> to vector<16x16xf32>
    %27 = vector.broadcast %24 : f32 to vector<16x16xf32>
    %28 = arith.mulf %26, %27 : vector<16x16xf32>
    %29 = arith.addf %23, %28 : vector<16x16xf32>
    %c1_18 = arith.constant 1 : index
    %30 = memref.load %arg1[%c1_18] : memref<36xf32, #tpu.memory_space<smem>>
    %c2 = arith.constant 2 : index
    %c0_19 = arith.constant 0 : index
    %c1_20 = arith.constant 1 : index
    %31 = vector.load %arg4[%c2, %c0_19, %c1_20] : memref<16x18x18xf32, #tpu.memory_space<vmem>>, vector<1x16x16xf32>
    %32 = vector.shape_cast %31 : vector<1x16x16xf32> to vector<16x16xf32>
    %33 = vector.broadcast %30 : f32 to vector<16x16xf32>
    %34 = arith.mulf %32, %33 : vector<16x16xf32>
    %35 = arith.addf %29, %34 : vector<16x16xf32>
    %c10 = arith.constant 10 : index
    %36 = memref.load %arg1[%c10] : memref<36xf32, #tpu.memory_space<smem>>
    %c6 = arith.constant 6 : index
    %c0_21 = arith.constant 0 : index
    %c1_22 = arith.constant 1 : index
    %37 = vector.load %arg4[%c6, %c0_21, %c1_22] : memref<16x18x18xf32, #tpu.memory_space<vmem>>, vector<1x16x16xf32>
    %38 = vector.shape_cast %37 : vector<1x16x16xf32> to vector<16x16xf32>
    %39 = vector.broadcast %36 : f32 to vector<16x16xf32>
    %40 = arith.mulf %38, %39 : vector<16x16xf32>
    %41 = arith.addf %35, %40 : vector<16x16xf32>
    %c19 = arith.constant 19 : index
    %42 = memref.load %arg1[%c19] : memref<36xf32, #tpu.memory_space<smem>>
    %c10_23 = arith.constant 10 : index
    %c0_24 = arith.constant 0 : index
    %c1_25 = arith.constant 1 : index
    %43 = vector.load %arg4[%c10_23, %c0_24, %c1_25] : memref<16x18x18xf32, #tpu.memory_space<vmem>>, vector<1x16x16xf32>
    %44 = vector.shape_cast %43 : vector<1x16x16xf32> to vector<16x16xf32>
    %45 = vector.broadcast %42 : f32 to vector<16x16xf32>
    %46 = arith.mulf %44, %45 : vector<16x16xf32>
    %47 = arith.addf %41, %46 : vector<16x16xf32>
    %c28 = arith.constant 28 : index
    %48 = memref.load %arg1[%c28] : memref<36xf32, #tpu.memory_space<smem>>
    %c14 = arith.constant 14 : index
    %c0_26 = arith.constant 0 : index
    %c1_27 = arith.constant 1 : index
    %49 = vector.load %arg4[%c14, %c0_26, %c1_27] : memref<16x18x18xf32, #tpu.memory_space<vmem>>, vector<1x16x16xf32>
    %50 = vector.shape_cast %49 : vector<1x16x16xf32> to vector<16x16xf32>
    %51 = vector.broadcast %48 : f32 to vector<16x16xf32>
    %52 = arith.mulf %50, %51 : vector<16x16xf32>
    %53 = arith.addf %47, %52 : vector<16x16xf32>
    %c2_28 = arith.constant 2 : index
    %54 = memref.load %arg1[%c2_28] : memref<36xf32, #tpu.memory_space<smem>>
    %c3_29 = arith.constant 3 : index
    %c0_30 = arith.constant 0 : index
    %c1_31 = arith.constant 1 : index
    %55 = vector.load %arg4[%c3_29, %c0_30, %c1_31] : memref<16x18x18xf32, #tpu.memory_space<vmem>>, vector<1x16x16xf32>
    %56 = vector.shape_cast %55 : vector<1x16x16xf32> to vector<16x16xf32>
    %57 = vector.broadcast %54 : f32 to vector<16x16xf32>
    %58 = arith.mulf %56, %57 : vector<16x16xf32>
    %59 = arith.addf %53, %58 : vector<16x16xf32>
    %c11_32 = arith.constant 11 : index
    %60 = memref.load %arg1[%c11_32] : memref<36xf32, #tpu.memory_space<smem>>
    %c7_33 = arith.constant 7 : index
    %c0_34 = arith.constant 0 : index
    %c1_35 = arith.constant 1 : index
    %61 = vector.load %arg4[%c7_33, %c0_34, %c1_35] : memref<16x18x18xf32, #tpu.memory_space<vmem>>, vector<1x16x16xf32>
    %62 = vector.shape_cast %61 : vector<1x16x16xf32> to vector<16x16xf32>
    %63 = vector.broadcast %60 : f32 to vector<16x16xf32>
    %64 = arith.mulf %62, %63 : vector<16x16xf32>
    %65 = arith.addf %59, %64 : vector<16x16xf32>
    %c20 = arith.constant 20 : index
    %66 = memref.load %arg1[%c20] : memref<36xf32, #tpu.memory_space<smem>>
    %c11_36 = arith.constant 11 : index
    %c0_37 = arith.constant 0 : index
    %c1_38 = arith.constant 1 : index
    %67 = vector.load %arg4[%c11_36, %c0_37, %c1_38] : memref<16x18x18xf32, #tpu.memory_space<vmem>>, vector<1x16x16xf32>
    %68 = vector.shape_cast %67 : vector<1x16x16xf32> to vector<16x16xf32>
    %69 = vector.broadcast %66 : f32 to vector<16x16xf32>
    %70 = arith.mulf %68, %69 : vector<16x16xf32>
    %71 = arith.addf %65, %70 : vector<16x16xf32>
    %c29 = arith.constant 29 : index
    %72 = memref.load %arg1[%c29] : memref<36xf32, #tpu.memory_space<smem>>
    %c15_39 = arith.constant 15 : index
    %c0_40 = arith.constant 0 : index
    %c1_41 = arith.constant 1 : index
    %73 = vector.load %arg4[%c15_39, %c0_40, %c1_41] : memref<16x18x18xf32, #tpu.memory_space<vmem>>, vector<1x16x16xf32>
    %74 = vector.shape_cast %73 : vector<1x16x16xf32> to vector<16x16xf32>
    %75 = vector.broadcast %72 : f32 to vector<16x16xf32>
    %76 = arith.mulf %74, %75 : vector<16x16xf32>
    %77 = arith.addf %71, %76 : vector<16x16xf32>
    %c3_42 = arith.constant 3 : index
    %78 = memref.load %arg1[%c3_42] : memref<36xf32, #tpu.memory_space<smem>>
    %c1_43 = arith.constant 1 : index
    %c1_44 = arith.constant 1 : index
    %c0_45 = arith.constant 0 : index
    %79 = vector.load %arg4[%c1_43, %c1_44, %c0_45] : memref<16x18x18xf32, #tpu.memory_space<vmem>>, vector<1x16x16xf32>
    %80 = vector.shape_cast %79 : vector<1x16x16xf32> to vector<16x16xf32>
    %81 = vector.broadcast %78 : f32 to vector<16x16xf32>
    %82 = arith.mulf %80, %81 : vector<16x16xf32>
    %83 = arith.addf %77, %82 : vector<16x16xf32>
    %c12 = arith.constant 12 : index
    %84 = memref.load %arg1[%c12] : memref<36xf32, #tpu.memory_space<smem>>
    %c5 = arith.constant 5 : index
    %c1_46 = arith.constant 1 : index
    %c0_47 = arith.constant 0 : index
    %85 = vector.load %arg4[%c5, %c1_46, %c0_47] : memref<16x18x18xf32, #tpu.memory_space<vmem>>, vector<1x16x16xf32>
    %86 = vector.shape_cast %85 : vector<1x16x16xf32> to vector<16x16xf32>
    %87 = vector.broadcast %84 : f32 to vector<16x16xf32>
    %88 = arith.mulf %86, %87 : vector<16x16xf32>
    %89 = arith.addf %83, %88 : vector<16x16xf32>
    %c21 = arith.constant 21 : index
    %90 = memref.load %arg1[%c21] : memref<36xf32, #tpu.memory_space<smem>>
    %c9_48 = arith.constant 9 : index
    %c1_49 = arith.constant 1 : index
    %c0_50 = arith.constant 0 : index
    %91 = vector.load %arg4[%c9_48, %c1_49, %c0_50] : memref<16x18x18xf32, #tpu.memory_space<vmem>>, vector<1x16x16xf32>
    %92 = vector.shape_cast %91 : vector<1x16x16xf32> to vector<16x16xf32>
    %93 = vector.broadcast %90 : f32 to vector<16x16xf32>
    %94 = arith.mulf %92, %93 : vector<16x16xf32>
    %95 = arith.addf %89, %94 : vector<16x16xf32>
    %c30 = arith.constant 30 : index
    %96 = memref.load %arg1[%c30] : memref<36xf32, #tpu.memory_space<smem>>
    %c13 = arith.constant 13 : index
    %c1_51 = arith.constant 1 : index
    %c0_52 = arith.constant 0 : index
    %97 = vector.load %arg4[%c13, %c1_51, %c0_52] : memref<16x18x18xf32, #tpu.memory_space<vmem>>, vector<1x16x16xf32>
    %98 = vector.shape_cast %97 : vector<1x16x16xf32> to vector<16x16xf32>
    %99 = vector.broadcast %96 : f32 to vector<16x16xf32>
    %100 = arith.mulf %98, %99 : vector<16x16xf32>
    %101 = arith.addf %95, %100 : vector<16x16xf32>
    %c4 = arith.constant 4 : index
    %102 = memref.load %arg1[%c4] : memref<36xf32, #tpu.memory_space<smem>>
    %c0_53 = arith.constant 0 : index
    %c1_54 = arith.constant 1 : index
    %c1_55 = arith.constant 1 : index
    %103 = vector.load %arg4[%c0_53, %c1_54, %c1_55] : memref<16x18x18xf32, #tpu.memory_space<vmem>>, vector<1x16x16xf32>
    %104 = vector.shape_cast %103 : vector<1x16x16xf32> to vector<16x16xf32>
    %105 = vector.broadcast %102 : f32 to vector<16x16xf32>
    %106 = arith.mulf %104, %105 : vector<16x16xf32>
    %107 = arith.addf %101, %106 : vector<16x16xf32>
    %c13_56 = arith.constant 13 : index
    %108 = memref.load %arg1[%c13_56] : memref<36xf32, #tpu.memory_space<smem>>
    %c4_57 = arith.constant 4 : index
    %c1_58 = arith.constant 1 : index
    %c1_59 = arith.constant 1 : index
    %109 = vector.load %arg4[%c4_57, %c1_58, %c1_59] : memref<16x18x18xf32, #tpu.memory_space<vmem>>, vector<1x16x16xf32>
    %110 = vector.shape_cast %109 : vector<1x16x16xf32> to vector<16x16xf32>
    %111 = vector.broadcast %108 : f32 to vector<16x16xf32>
    %112 = arith.mulf %110, %111 : vector<16x16xf32>
    %113 = arith.addf %107, %112 : vector<16x16xf32>
    %c22 = arith.constant 22 : index
    %114 = memref.load %arg1[%c22] : memref<36xf32, #tpu.memory_space<smem>>
    %c8 = arith.constant 8 : index
    %c1_60 = arith.constant 1 : index
    %c1_61 = arith.constant 1 : index
    %115 = vector.load %arg4[%c8, %c1_60, %c1_61] : memref<16x18x18xf32, #tpu.memory_space<vmem>>, vector<1x16x16xf32>
    %116 = vector.shape_cast %115 : vector<1x16x16xf32> to vector<16x16xf32>
    %117 = vector.broadcast %114 : f32 to vector<16x16xf32>
    %118 = arith.mulf %116, %117 : vector<16x16xf32>
    %119 = arith.addf %113, %118 : vector<16x16xf32>
    %c31 = arith.constant 31 : index
    %120 = memref.load %arg1[%c31] : memref<36xf32, #tpu.memory_space<smem>>
    %c12_62 = arith.constant 12 : index
    %c1_63 = arith.constant 1 : index
    %c1_64 = arith.constant 1 : index
    %121 = vector.load %arg4[%c12_62, %c1_63, %c1_64] : memref<16x18x18xf32, #tpu.memory_space<vmem>>, vector<1x16x16xf32>
    %122 = vector.shape_cast %121 : vector<1x16x16xf32> to vector<16x16xf32>
    %123 = vector.broadcast %120 : f32 to vector<16x16xf32>
    %124 = arith.mulf %122, %123 : vector<16x16xf32>
    %125 = arith.addf %119, %124 : vector<16x16xf32>
    %c5_65 = arith.constant 5 : index
    %126 = memref.load %arg1[%c5_65] : memref<36xf32, #tpu.memory_space<smem>>
    %c1_66 = arith.constant 1 : index
    %c1_67 = arith.constant 1 : index
    %c1_68 = arith.constant 1 : index
    %127 = vector.load %arg4[%c1_66, %c1_67, %c1_68] : memref<16x18x18xf32, #tpu.memory_space<vmem>>, vector<1x16x16xf32>
    %128 = vector.shape_cast %127 : vector<1x16x16xf32> to vector<16x16xf32>
    %129 = vector.broadcast %126 : f32 to vector<16x16xf32>
    %130 = arith.mulf %128, %129 : vector<16x16xf32>
    %131 = arith.addf %125, %130 : vector<16x16xf32>
    %c14_69 = arith.constant 14 : index
    %132 = memref.load %arg1[%c14_69] : memref<36xf32, #tpu.memory_space<smem>>
    %c5_70 = arith.constant 5 : index
    %c1_71 = arith.constant 1 : index
    %c1_72 = arith.constant 1 : index
    %133 = vector.load %arg4[%c5_70, %c1_71, %c1_72] : memref<16x18x18xf32, #tpu.memory_space<vmem>>, vector<1x16x16xf32>
    %134 = vector.shape_cast %133 : vector<1x16x16xf32> to vector<16x16xf32>
    %135 = vector.broadcast %132 : f32 to vector<16x16xf32>
    %136 = arith.mulf %134, %135 : vector<16x16xf32>
    %137 = arith.addf %131, %136 : vector<16x16xf32>
    %c23 = arith.constant 23 : index
    %138 = memref.load %arg1[%c23] : memref<36xf32, #tpu.memory_space<smem>>
    %c9_73 = arith.constant 9 : index
    %c1_74 = arith.constant 1 : index
    %c1_75 = arith.constant 1 : index
    %139 = vector.load %arg4[%c9_73, %c1_74, %c1_75] : memref<16x18x18xf32, #tpu.memory_space<vmem>>, vector<1x16x16xf32>
    %140 = vector.shape_cast %139 : vector<1x16x16xf32> to vector<16x16xf32>
    %141 = vector.broadcast %138 : f32 to vector<16x16xf32>
    %142 = arith.mulf %140, %141 : vector<16x16xf32>
    %143 = arith.addf %137, %142 : vector<16x16xf32>
    %c32 = arith.constant 32 : index
    %144 = memref.load %arg1[%c32] : memref<36xf32, #tpu.memory_space<smem>>
    %c13_76 = arith.constant 13 : index
    %c1_77 = arith.constant 1 : index
    %c1_78 = arith.constant 1 : index
    %145 = vector.load %arg4[%c13_76, %c1_77, %c1_78] : memref<16x18x18xf32, #tpu.memory_space<vmem>>, vector<1x16x16xf32>
    %146 = vector.shape_cast %145 : vector<1x16x16xf32> to vector<16x16xf32>
    %147 = vector.broadcast %144 : f32 to vector<16x16xf32>
    %148 = arith.mulf %146, %147 : vector<16x16xf32>
    %149 = arith.addf %143, %148 : vector<16x16xf32>
    %c6_79 = arith.constant 6 : index
    %150 = memref.load %arg1[%c6_79] : memref<36xf32, #tpu.memory_space<smem>>
    %c3_80 = arith.constant 3 : index
    %c1_81 = arith.constant 1 : index
    %c0_82 = arith.constant 0 : index
    %151 = vector.load %arg4[%c3_80, %c1_81, %c0_82] : memref<16x18x18xf32, #tpu.memory_space<vmem>>, vector<1x16x16xf32>
    %152 = vector.shape_cast %151 : vector<1x16x16xf32> to vector<16x16xf32>
    %153 = vector.broadcast %150 : f32 to vector<16x16xf32>
    %154 = arith.mulf %152, %153 : vector<16x16xf32>
    %155 = arith.addf %149, %154 : vector<16x16xf32>
    %c15_83 = arith.constant 15 : index
    %156 = memref.load %arg1[%c15_83] : memref<36xf32, #tpu.memory_space<smem>>
    %c7_84 = arith.constant 7 : index
    %c1_85 = arith.constant 1 : index
    %c0_86 = arith.constant 0 : index
    %157 = vector.load %arg4[%c7_84, %c1_85, %c0_86] : memref<16x18x18xf32, #tpu.memory_space<vmem>>, vector<1x16x16xf32>
    %158 = vector.shape_cast %157 : vector<1x16x16xf32> to vector<16x16xf32>
    %159 = vector.broadcast %156 : f32 to vector<16x16xf32>
    %160 = arith.mulf %158, %159 : vector<16x16xf32>
    %161 = arith.addf %155, %160 : vector<16x16xf32>
    %c24 = arith.constant 24 : index
    %162 = memref.load %arg1[%c24] : memref<36xf32, #tpu.memory_space<smem>>
    %c11_87 = arith.constant 11 : index
    %c1_88 = arith.constant 1 : index
    %c0_89 = arith.constant 0 : index
    %163 = vector.load %arg4[%c11_87, %c1_88, %c0_89] : memref<16x18x18xf32, #tpu.memory_space<vmem>>, vector<1x16x16xf32>
    %164 = vector.shape_cast %163 : vector<1x16x16xf32> to vector<16x16xf32>
    %165 = vector.broadcast %162 : f32 to vector<16x16xf32>
    %166 = arith.mulf %164, %165 : vector<16x16xf32>
    %167 = arith.addf %161, %166 : vector<16x16xf32>
    %c33 = arith.constant 33 : index
    %168 = memref.load %arg1[%c33] : memref<36xf32, #tpu.memory_space<smem>>
    %c15_90 = arith.constant 15 : index
    %c1_91 = arith.constant 1 : index
    %c0_92 = arith.constant 0 : index
    %169 = vector.load %arg4[%c15_90, %c1_91, %c0_92] : memref<16x18x18xf32, #tpu.memory_space<vmem>>, vector<1x16x16xf32>
    %170 = vector.shape_cast %169 : vector<1x16x16xf32> to vector<16x16xf32>
    %171 = vector.broadcast %168 : f32 to vector<16x16xf32>
    %172 = arith.mulf %170, %171 : vector<16x16xf32>
    %173 = arith.addf %167, %172 : vector<16x16xf32>
    %c7_93 = arith.constant 7 : index
    %174 = memref.load %arg1[%c7_93] : memref<36xf32, #tpu.memory_space<smem>>
    %c2_94 = arith.constant 2 : index
    %c1_95 = arith.constant 1 : index
    %c1_96 = arith.constant 1 : index
    %175 = vector.load %arg4[%c2_94, %c1_95, %c1_96] : memref<16x18x18xf32, #tpu.memory_space<vmem>>, vector<1x16x16xf32>
    %176 = vector.shape_cast %175 : vector<1x16x16xf32> to vector<16x16xf32>
    %177 = vector.broadcast %174 : f32 to vector<16x16xf32>
    %178 = arith.mulf %176, %177 : vector<16x16xf32>
    %179 = arith.addf %173, %178 : vector<16x16xf32>
    %c16 = arith.constant 16 : index
    %180 = memref.load %arg1[%c16] : memref<36xf32, #tpu.memory_space<smem>>
    %c6_97 = arith.constant 6 : index
    %c1_98 = arith.constant 1 : index
    %c1_99 = arith.constant 1 : index
    %181 = vector.load %arg4[%c6_97, %c1_98, %c1_99] : memref<16x18x18xf32, #tpu.memory_space<vmem>>, vector<1x16x16xf32>
    %182 = vector.shape_cast %181 : vector<1x16x16xf32> to vector<16x16xf32>
    %183 = vector.broadcast %180 : f32 to vector<16x16xf32>
    %184 = arith.mulf %182, %183 : vector<16x16xf32>
    %185 = arith.addf %179, %184 : vector<16x16xf32>
    %c25 = arith.constant 25 : index
    %186 = memref.load %arg1[%c25] : memref<36xf32, #tpu.memory_space<smem>>
    %c10_100 = arith.constant 10 : index
    %c1_101 = arith.constant 1 : index
    %c1_102 = arith.constant 1 : index
    %187 = vector.load %arg4[%c10_100, %c1_101, %c1_102] : memref<16x18x18xf32, #tpu.memory_space<vmem>>, vector<1x16x16xf32>
    %188 = vector.shape_cast %187 : vector<1x16x16xf32> to vector<16x16xf32>
    %189 = vector.broadcast %186 : f32 to vector<16x16xf32>
    %190 = arith.mulf %188, %189 : vector<16x16xf32>
    %191 = arith.addf %185, %190 : vector<16x16xf32>
    %c34 = arith.constant 34 : index
    %192 = memref.load %arg1[%c34] : memref<36xf32, #tpu.memory_space<smem>>
    %c14_103 = arith.constant 14 : index
    %c1_104 = arith.constant 1 : index
    %c1_105 = arith.constant 1 : index
    %193 = vector.load %arg4[%c14_103, %c1_104, %c1_105] : memref<16x18x18xf32, #tpu.memory_space<vmem>>, vector<1x16x16xf32>
    %194 = vector.shape_cast %193 : vector<1x16x16xf32> to vector<16x16xf32>
    %195 = vector.broadcast %192 : f32 to vector<16x16xf32>
    %196 = arith.mulf %194, %195 : vector<16x16xf32>
    %197 = arith.addf %191, %196 : vector<16x16xf32>
    %c8_106 = arith.constant 8 : index
    %198 = memref.load %arg1[%c8_106] : memref<36xf32, #tpu.memory_space<smem>>
    %c3_107 = arith.constant 3 : index
    %c1_108 = arith.constant 1 : index
    %c1_109 = arith.constant 1 : index
    %199 = vector.load %arg4[%c3_107, %c1_108, %c1_109] : memref<16x18x18xf32, #tpu.memory_space<vmem>>, vector<1x16x16xf32>
    %200 = vector.shape_cast %199 : vector<1x16x16xf32> to vector<16x16xf32>
    %201 = vector.broadcast %198 : f32 to vector<16x16xf32>
    %202 = arith.mulf %200, %201 : vector<16x16xf32>
    %203 = arith.addf %197, %202 : vector<16x16xf32>
    %c17 = arith.constant 17 : index
    %204 = memref.load %arg1[%c17] : memref<36xf32, #tpu.memory_space<smem>>
    %c7_110 = arith.constant 7 : index
    %c1_111 = arith.constant 1 : index
    %c1_112 = arith.constant 1 : index
    %205 = vector.load %arg4[%c7_110, %c1_111, %c1_112] : memref<16x18x18xf32, #tpu.memory_space<vmem>>, vector<1x16x16xf32>
    %206 = vector.shape_cast %205 : vector<1x16x16xf32> to vector<16x16xf32>
    %207 = vector.broadcast %204 : f32 to vector<16x16xf32>
    %208 = arith.mulf %206, %207 : vector<16x16xf32>
    %209 = arith.addf %203, %208 : vector<16x16xf32>
    %c26 = arith.constant 26 : index
    %210 = memref.load %arg1[%c26] : memref<36xf32, #tpu.memory_space<smem>>
    %c11_113 = arith.constant 11 : index
    %c1_114 = arith.constant 1 : index
    %c1_115 = arith.constant 1 : index
    %211 = vector.load %arg4[%c11_113, %c1_114, %c1_115] : memref<16x18x18xf32, #tpu.memory_space<vmem>>, vector<1x16x16xf32>
    %212 = vector.shape_cast %211 : vector<1x16x16xf32> to vector<16x16xf32>
    %213 = vector.broadcast %210 : f32 to vector<16x16xf32>
    %214 = arith.mulf %212, %213 : vector<16x16xf32>
    %215 = arith.addf %209, %214 : vector<16x16xf32>
    %c35 = arith.constant 35 : index
    %216 = memref.load %arg1[%c35] : memref<36xf32, #tpu.memory_space<smem>>
    %c15_116 = arith.constant 15 : index
    %c1_117 = arith.constant 1 : index
    %c1_118 = arith.constant 1 : index
    %217 = vector.load %arg4[%c15_116, %c1_117, %c1_118] : memref<16x18x18xf32, #tpu.memory_space<vmem>>, vector<1x16x16xf32>
    %218 = vector.shape_cast %217 : vector<1x16x16xf32> to vector<16x16xf32>
    %219 = vector.broadcast %216 : f32 to vector<16x16xf32>
    %220 = arith.mulf %218, %219 : vector<16x16xf32>
    %221 = arith.addf %215, %220 : vector<16x16xf32>
    %c0_119 = arith.constant 0 : index
    %c0_120 = arith.constant 0 : index
    %c0_121 = arith.constant 0 : index
    %c0_122 = arith.constant 0 : index
    %222 = vector.load %arg3[%c0_119, %c0_120, %c0_121, %c0_122] : memref<1x4x16x16xf32, #tpu.memory_space<vmem>>, vector<1x1x16x16xf32>
    %223 = vector.shape_cast %222 : vector<1x1x16x16xf32> to vector<16x16xf32>
    %224 = vector.shape_cast %221 : vector<16x16xf32> to vector<1x1x16x16xf32>
    tpu.vector_store %arg3[%c0_119, %c0_120, %c0_121, %c0_122], %224 {strides = array<i32>} : memref<1x4x16x16xf32, #tpu.memory_space<vmem>>, vector<1x1x16x16xf32>,
    %cst_123 = arith.constant 0.000000e+00 : f32
    %225 = vector.broadcast %cst_123 : f32 to vector<16x16xf32>
    %c0_124 = arith.constant 0 : index
    %226 = memref.load %arg1[%c0_124] : memref<36xf32, #tpu.memory_space<smem>>
    %227 = vector.broadcast %226 : f32 to vector<16x16xf32>
    %228 = arith.mulf %32, %227 : vector<16x16xf32>
    %229 = arith.addf %225, %228 : vector<16x16xf32>
    %c9_125 = arith.constant 9 : index
    %230 = memref.load %arg1[%c9_125] : memref<36xf32, #tpu.memory_space<smem>>
    %231 = vector.broadcast %230 : f32 to vector<16x16xf32>
    %232 = arith.mulf %38, %231 : vector<16x16xf32>
    %233 = arith.addf %229, %232 : vector<16x16xf32>
    %c18_126 = arith.constant 18 : index
    %234 = memref.load %arg1[%c18_126] : memref<36xf32, #tpu.memory_space<smem>>
    %235 = vector.broadcast %234 : f32 to vector<16x16xf32>
    %236 = arith.mulf %44, %235 : vector<16x16xf32>
    %237 = arith.addf %233, %236 : vector<16x16xf32>
    %c27_127 = arith.constant 27 : index
    %238 = memref.load %arg1[%c27_127] : memref<36xf32, #tpu.memory_space<smem>>
    %239 = vector.broadcast %238 : f32 to vector<16x16xf32>
    %240 = arith.mulf %50, %239 : vector<16x16xf32>
    %241 = arith.addf %237, %240 : vector<16x16xf32>
    %c1_128 = arith.constant 1 : index
    %242 = memref.load %arg1[%c1_128] : memref<36xf32, #tpu.memory_space<smem>>
    %243 = vector.broadcast %242 : f32 to vector<16x16xf32>
    %244 = arith.mulf %56, %243 : vector<16x16xf32>
    %245 = arith.addf %241, %244 : vector<16x16xf32>
    %c10_129 = arith.constant 10 : index
    %246 = memref.load %arg1[%c10_129] : memref<36xf32, #tpu.memory_space<smem>>
    %247 = vector.broadcast %246 : f32 to vector<16x16xf32>
    %248 = arith.mulf %62, %247 : vector<16x16xf32>
    %249 = arith.addf %245, %248 : vector<16x16xf32>
    %c19_130 = arith.constant 19 : index
    %250 = memref.load %arg1[%c19_130] : memref<36xf32, #tpu.memory_space<smem>>
    %251 = vector.broadcast %250 : f32 to vector<16x16xf32>
    %252 = arith.mulf %68, %251 : vector<16x16xf32>
    %253 = arith.addf %249, %252 : vector<16x16xf32>
    %c28_131 = arith.constant 28 : index
    %254 = memref.load %arg1[%c28_131] : memref<36xf32, #tpu.memory_space<smem>>
    %255 = vector.broadcast %254 : f32 to vector<16x16xf32>
    %256 = arith.mulf %74, %255 : vector<16x16xf32>
    %257 = arith.addf %253, %256 : vector<16x16xf32>
    %c2_132 = arith.constant 2 : index
    %258 = memref.load %arg1[%c2_132] : memref<36xf32, #tpu.memory_space<smem>>
    %c2_133 = arith.constant 2 : index
    %c0_134 = arith.constant 0 : index
    %c2_135 = arith.constant 2 : index
    %259 = vector.load %arg4[%c2_133, %c0_134, %c2_135] : memref<16x18x18xf32, #tpu.memory_space<vmem>>, vector<1x16x16xf32>
    %260 = vector.shape_cast %259 : vector<1x16x16xf32> to vector<16x16xf32>
    %261 = vector.broadcast %258 : f32 to vector<16x16xf32>
    %262 = arith.mulf %260, %261 : vector<16x16xf32>
    %263 = arith.addf %257, %262 : vector<16x16xf32>
    %c11_136 = arith.constant 11 : index
    %264 = memref.load %arg1[%c11_136] : memref<36xf32, #tpu.memory_space<smem>>
    %c6_137 = arith.constant 6 : index
    %c0_138 = arith.constant 0 : index
    %c2_139 = arith.constant 2 : index
    %265 = vector.load %arg4[%c6_137, %c0_138, %c2_139] : memref<16x18x18xf32, #tpu.memory_space<vmem>>, vector<1x16x16xf32>
    %266 = vector.shape_cast %265 : vector<1x16x16xf32> to vector<16x16xf32>
    %267 = vector.broadcast %264 : f32 to vector<16x16xf32>
    %268 = arith.mulf %266, %267 : vector<16x16xf32>
    %269 = arith.addf %263, %268 : vector<16x16xf32>
    %c20_140 = arith.constant 20 : index
    %270 = memref.load %arg1[%c20_140] : memref<36xf32, #tpu.memory_space<smem>>
    %c10_141 = arith.constant 10 : index
    %c0_142 = arith.constant 0 : index
    %c2_143 = arith.constant 2 : index
    %271 = vector.load %arg4[%c10_141, %c0_142, %c2_143] : memref<16x18x18xf32, #tpu.memory_space<vmem>>, vector<1x16x16xf32>
    %272 = vector.shape_cast %271 : vector<1x16x16xf32> to vector<16x16xf32>
    %273 = vector.broadcast %270 : f32 to vector<16x16xf32>
    %274 = arith.mulf %272, %273 : vector<16x16xf32>
    %275 = arith.addf %269, %274 : vector<16x16xf32>
    %c29_144 = arith.constant 29 : index
    %276 = memref.load %arg1[%c29_144] : memref<36xf32, #tpu.memory_space<smem>>
    %c14_145 = arith.constant 14 : index
    %c0_146 = arith.constant 0 : index
    %c2_147 = arith.constant 2 : index
    %277 = vector.load %arg4[%c14_145, %c0_146, %c2_147] : memref<16x18x18xf32, #tpu.memory_space<vmem>>, vector<1x16x16xf32>
    %278 = vector.shape_cast %277 : vector<1x16x16xf32> to vector<16x16xf32>
    %279 = vector.broadcast %276 : f32 to vector<16x16xf32>
    %280 = arith.mulf %278, %279 : vector<16x16xf32>
    %281 = arith.addf %275, %280 : vector<16x16xf32>
    %c3_148 = arith.constant 3 : index
    %282 = memref.load %arg1[%c3_148] : memref<36xf32, #tpu.memory_space<smem>>
    %283 = vector.broadcast %282 : f32 to vector<16x16xf32>
    %284 = arith.mulf %104, %283 : vector<16x16xf32>
    %285 = arith.addf %281, %284 : vector<16x16xf32>
    %c12_149 = arith.constant 12 : index
    %286 = memref.load %arg1[%c12_149] : memref<36xf32, #tpu.memory_space<smem>>
    %287 = vector.broadcast %286 : f32 to vector<16x16xf32>
    %288 = arith.mulf %110, %287 : vector<16x16xf32>
    %289 = arith.addf %285, %288 : vector<16x16xf32>
    %c21_150 = arith.constant 21 : index
    %290 = memref.load %arg1[%c21_150] : memref<36xf32, #tpu.memory_space<smem>>
    %291 = vector.broadcast %290 : f32 to vector<16x16xf32>
    %292 = arith.mulf %116, %291 : vector<16x16xf32>
    %293 = arith.addf %289, %292 : vector<16x16xf32>
    %c30_151 = arith.constant 30 : index
    %294 = memref.load %arg1[%c30_151] : memref<36xf32, #tpu.memory_space<smem>>
    %295 = vector.broadcast %294 : f32 to vector<16x16xf32>
    %296 = arith.mulf %122, %295 : vector<16x16xf32>
    %297 = arith.addf %293, %296 : vector<16x16xf32>
    %c4_152 = arith.constant 4 : index
    %298 = memref.load %arg1[%c4_152] : memref<36xf32, #tpu.memory_space<smem>>
    %299 = vector.broadcast %298 : f32 to vector<16x16xf32>
    %300 = arith.mulf %128, %299 : vector<16x16xf32>
    %301 = arith.addf %297, %300 : vector<16x16xf32>
    %c13_153 = arith.constant 13 : index
    %302 = memref.load %arg1[%c13_153] : memref<36xf32, #tpu.memory_space<smem>>
    %303 = vector.broadcast %302 : f32 to vector<16x16xf32>
    %304 = arith.mulf %134, %303 : vector<16x16xf32>
    %305 = arith.addf %301, %304 : vector<16x16xf32>
    %c22_154 = arith.constant 22 : index
    %306 = memref.load %arg1[%c22_154] : memref<36xf32, #tpu.memory_space<smem>>
    %307 = vector.broadcast %306 : f32 to vector<16x16xf32>
    %308 = arith.mulf %140, %307 : vector<16x16xf32>
    %309 = arith.addf %305, %308 : vector<16x16xf32>
    %c31_155 = arith.constant 31 : index
    %310 = memref.load %arg1[%c31_155] : memref<36xf32, #tpu.memory_space<smem>>
    %311 = vector.broadcast %310 : f32 to vector<16x16xf32>
    %312 = arith.mulf %146, %311 : vector<16x16xf32>
    %313 = arith.addf %309, %312 : vector<16x16xf32>
    %c5_156 = arith.constant 5 : index
    %314 = memref.load %arg1[%c5_156] : memref<36xf32, #tpu.memory_space<smem>>
    %c0_157 = arith.constant 0 : index
    %c1_158 = arith.constant 1 : index
    %c2_159 = arith.constant 2 : index
    %315 = vector.load %arg4[%c0_157, %c1_158, %c2_159] : memref<16x18x18xf32, #tpu.memory_space<vmem>>, vector<1x16x16xf32>
    %316 = vector.shape_cast %315 : vector<1x16x16xf32> to vector<16x16xf32>
    %317 = vector.broadcast %314 : f32 to vector<16x16xf32>
    %318 = arith.mulf %316, %317 : vector<16x16xf32>
    %319 = arith.addf %313, %318 : vector<16x16xf32>
    %c14_160 = arith.constant 14 : index
    %320 = memref.load %arg1[%c14_160] : memref<36xf32, #tpu.memory_space<smem>>
    %c4_161 = arith.constant 4 : index
    %c1_162 = arith.constant 1 : index
    %c2_163 = arith.constant 2 : index
    %321 = vector.load %arg4[%c4_161, %c1_162, %c2_163] : memref<16x18x18xf32, #tpu.memory_space<vmem>>, vector<1x16x16xf32>
    %322 = vector.shape_cast %321 : vector<1x16x16xf32> to vector<16x16xf32>
    %323 = vector.broadcast %320 : f32 to vector<16x16xf32>
    %324 = arith.mulf %322, %323 : vector<16x16xf32>
    %325 = arith.addf %319, %324 : vector<16x16xf32>
    %c23_164 = arith.constant 23 : index
    %326 = memref.load %arg1[%c23_164] : memref<36xf32, #tpu.memory_space<smem>>
    %c8_165 = arith.constant 8 : index
    %c1_166 = arith.constant 1 : index
    %c2_167 = arith.constant 2 : index
    %327 = vector.load %arg4[%c8_165, %c1_166, %c2_167] : memref<16x18x18xf32, #tpu.memory_space<vmem>>, vector<1x16x16xf32>
    %328 = vector.shape_cast %327 : vector<1x16x16xf32> to vector<16x16xf32>
    %329 = vector.broadcast %326 : f32 to vector<16x16xf32>
    %330 = arith.mulf %328, %329 : vector<16x16xf32>
    %331 = arith.addf %325, %330 : vector<16x16xf32>
    %c32_168 = arith.constant 32 : index
    %332 = memref.load %arg1[%c32_168] : memref<36xf32, #tpu.memory_space<smem>>
    %c12_169 = arith.constant 12 : index
    %c1_170 = arith.constant 1 : index
    %c2_171 = arith.constant 2 : index
    %333 = vector.load %arg4[%c12_169, %c1_170, %c2_171] : memref<16x18x18xf32, #tpu.memory_space<vmem>>, vector<1x16x16xf32>
    %334 = vector.shape_cast %333 : vector<1x16x16xf32> to vector<16x16xf32>
    %335 = vector.broadcast %332 : f32 to vector<16x16xf32>
    %336 = arith.mulf %334, %335 : vector<16x16xf32>
    %337 = arith.addf %331, %336 : vector<16x16xf32>
    %c6_172 = arith.constant 6 : index
    %338 = memref.load %arg1[%c6_172] : memref<36xf32, #tpu.memory_space<smem>>
    %339 = vector.broadcast %338 : f32 to vector<16x16xf32>
    %340 = arith.mulf %176, %339 : vector<16x16xf32>
    %341 = arith.addf %337, %340 : vector<16x16xf32>
    %c15_173 = arith.constant 15 : index
    %342 = memref.load %arg1[%c15_173] : memref<36xf32, #tpu.memory_space<smem>>
    %343 = vector.broadcast %342 : f32 to vector<16x16xf32>
    %344 = arith.mulf %182, %343 : vector<16x16xf32>
    %345 = arith.addf %341, %344 : vector<16x16xf32>
    %c24_174 = arith.constant 24 : index
    %346 = memref.load %arg1[%c24_174] : memref<36xf32, #tpu.memory_space<smem>>
    %347 = vector.broadcast %346 : f32 to vector<16x16xf32>
    %348 = arith.mulf %188, %347 : vector<16x16xf32>
    %349 = arith.addf %345, %348 : vector<16x16xf32>
    %c33_175 = arith.constant 33 : index
    %350 = memref.load %arg1[%c33_175] : memref<36xf32, #tpu.memory_space<smem>>
    %351 = vector.broadcast %350 : f32 to vector<16x16xf32>
    %352 = arith.mulf %194, %351 : vector<16x16xf32>
    %353 = arith.addf %349, %352 : vector<16x16xf32>
    %c7_176 = arith.constant 7 : index
    %354 = memref.load %arg1[%c7_176] : memref<36xf32, #tpu.memory_space<smem>>
    %355 = vector.broadcast %354 : f32 to vector<16x16xf32>
    %356 = arith.mulf %200, %355 : vector<16x16xf32>
    %357 = arith.addf %353, %356 : vector<16x16xf32>
    %c16_177 = arith.constant 16 : index
    %358 = memref.load %arg1[%c16_177] : memref<36xf32, #tpu.memory_space<smem>>
    %359 = vector.broadcast %358 : f32 to vector<16x16xf32>
    %360 = arith.mulf %206, %359 : vector<16x16xf32>
    %361 = arith.addf %357, %360 : vector<16x16xf32>
    %c25_178 = arith.constant 25 : index
    %362 = memref.load %arg1[%c25_178] : memref<36xf32, #tpu.memory_space<smem>>
    %363 = vector.broadcast %362 : f32 to vector<16x16xf32>
    %364 = arith.mulf %212, %363 : vector<16x16xf32>
    %365 = arith.addf %361, %364 : vector<16x16xf32>
    %c34_179 = arith.constant 34 : index
    %366 = memref.load %arg1[%c34_179] : memref<36xf32, #tpu.memory_space<smem>>
    %367 = vector.broadcast %366 : f32 to vector<16x16xf32>
    %368 = arith.mulf %218, %367 : vector<16x16xf32>
    %369 = arith.addf %365, %368 : vector<16x16xf32>
    %c8_180 = arith.constant 8 : index
    %370 = memref.load %arg1[%c8_180] : memref<36xf32, #tpu.memory_space<smem>>
    %c2_181 = arith.constant 2 : index
    %c1_182 = arith.constant 1 : index
    %c2_183 = arith.constant 2 : index
    %371 = vector.load %arg4[%c2_181, %c1_182, %c2_183] : memref<16x18x18xf32, #tpu.memory_space<vmem>>, vector<1x16x16xf32>
    %372 = vector.shape_cast %371 : vector<1x16x16xf32> to vector<16x16xf32>
    %373 = vector.broadcast %370 : f32 to vector<16x16xf32>
    %374 = arith.mulf %372, %373 : vector<16x16xf32>
    %375 = arith.addf %369, %374 : vector<16x16xf32>
    %c17_184 = arith.constant 17 : index
    %376 = memref.load %arg1[%c17_184] : memref<36xf32, #tpu.memory_space<smem>>
    %c6_185 = arith.constant 6 : index
    %c1_186 = arith.constant 1 : index
    %c2_187 = arith.constant 2 : index
    %377 = vector.load %arg4[%c6_185, %c1_186, %c2_187] : memref<16x18x18xf32, #tpu.memory_space<vmem>>, vector<1x16x16xf32>
    %378 = vector.shape_cast %377 : vector<1x16x16xf32> to vector<16x16xf32>
    %379 = vector.broadcast %376 : f32 to vector<16x16xf32>
    %380 = arith.mulf %378, %379 : vector<16x16xf32>
    %381 = arith.addf %375, %380 : vector<16x16xf32>
    %c26_188 = arith.constant 26 : index
    %382 = memref.load %arg1[%c26_188] : memref<36xf32, #tpu.memory_space<smem>>
    %c10_189 = arith.constant 10 : index
    %c1_190 = arith.constant 1 : index
    %c2_191 = arith.constant 2 : index
    %383 = vector.load %arg4[%c10_189, %c1_190, %c2_191] : memref<16x18x18xf32, #tpu.memory_space<vmem>>, vector<1x16x16xf32>
    %384 = vector.shape_cast %383 : vector<1x16x16xf32> to vector<16x16xf32>
    %385 = vector.broadcast %382 : f32 to vector<16x16xf32>
    %386 = arith.mulf %384, %385 : vector<16x16xf32>
    %387 = arith.addf %381, %386 : vector<16x16xf32>
    %c35_192 = arith.constant 35 : index
    %388 = memref.load %arg1[%c35_192] : memref<36xf32, #tpu.memory_space<smem>>
    %c14_193 = arith.constant 14 : index
    %c1_194 = arith.constant 1 : index
    %c2_195 = arith.constant 2 : index
    %389 = vector.load %arg4[%c14_193, %c1_194, %c2_195] : memref<16x18x18xf32, #tpu.memory_space<vmem>>, vector<1x16x16xf32>
    %390 = vector.shape_cast %389 : vector<1x16x16xf32> to vector<16x16xf32>
    %391 = vector.broadcast %388 : f32 to vector<16x16xf32>
    %392 = arith.mulf %390, %391 : vector<16x16xf32>
    %393 = arith.addf %387, %392 : vector<16x16xf32>
    %c0_196 = arith.constant 0 : index
    %c1_197 = arith.constant 1 : index
    %c0_198 = arith.constant 0 : index
    %c0_199 = arith.constant 0 : index
    %394 = vector.load %arg3[%c0_196, %c1_197, %c0_198, %c0_199] : memref<1x4x16x16xf32, #tpu.memory_space<vmem>>, vector<1x1x16x16xf32>
    %395 = vector.shape_cast %394 : vector<1x1x16x16xf32> to vector<16x16xf32>
    %396 = vector.shape_cast %393 : vector<16x16xf32> to vector<1x1x16x16xf32>
    tpu.vector_store %arg3[%c0_196, %c1_197, %c0_198, %c0_199], %396 {strides = array<i32>} : memref<1x4x16x16xf32, #tpu.memory_space<vmem>>, vector<1x1x16x16xf32>,
    %cst_200 = arith.constant 0.000000e+00 : f32
    %397 = vector.broadcast %cst_200 : f32 to vector<16x16xf32>
    %c0_201 = arith.constant 0 : index
    %398 = memref.load %arg1[%c0_201] : memref<36xf32, #tpu.memory_space<smem>>
    %399 = vector.broadcast %398 : f32 to vector<16x16xf32>
    %400 = arith.mulf %80, %399 : vector<16x16xf32>
    %401 = arith.addf %397, %400 : vector<16x16xf32>
    %c9_202 = arith.constant 9 : index
    %402 = memref.load %arg1[%c9_202] : memref<36xf32, #tpu.memory_space<smem>>
    %403 = vector.broadcast %402 : f32 to vector<16x16xf32>
    %404 = arith.mulf %86, %403 : vector<16x16xf32>
    %405 = arith.addf %401, %404 : vector<16x16xf32>
    %c18_203 = arith.constant 18 : index
    %406 = memref.load %arg1[%c18_203] : memref<36xf32, #tpu.memory_space<smem>>
    %407 = vector.broadcast %406 : f32 to vector<16x16xf32>
    %408 = arith.mulf %92, %407 : vector<16x16xf32>
    %409 = arith.addf %405, %408 : vector<16x16xf32>
    %c27_204 = arith.constant 27 : index
    %410 = memref.load %arg1[%c27_204] : memref<36xf32, #tpu.memory_space<smem>>
    %411 = vector.broadcast %410 : f32 to vector<16x16xf32>
    %412 = arith.mulf %98, %411 : vector<16x16xf32>
    %413 = arith.addf %409, %412 : vector<16x16xf32>
    %c1_205 = arith.constant 1 : index
    %414 = memref.load %arg1[%c1_205] : memref<36xf32, #tpu.memory_space<smem>>
    %415 = vector.broadcast %414 : f32 to vector<16x16xf32>
    %416 = arith.mulf %104, %415 : vector<16x16xf32>
    %417 = arith.addf %413, %416 : vector<16x16xf32>
    %c10_206 = arith.constant 10 : index
    %418 = memref.load %arg1[%c10_206] : memref<36xf32, #tpu.memory_space<smem>>
    %419 = vector.broadcast %418 : f32 to vector<16x16xf32>
    %420 = arith.mulf %110, %419 : vector<16x16xf32>
    %421 = arith.addf %417, %420 : vector<16x16xf32>
    %c19_207 = arith.constant 19 : index
    %422 = memref.load %arg1[%c19_207] : memref<36xf32, #tpu.memory_space<smem>>
    %423 = vector.broadcast %422 : f32 to vector<16x16xf32>
    %424 = arith.mulf %116, %423 : vector<16x16xf32>
    %425 = arith.addf %421, %424 : vector<16x16xf32>
    %c28_208 = arith.constant 28 : index
    %426 = memref.load %arg1[%c28_208] : memref<36xf32, #tpu.memory_space<smem>>
    %427 = vector.broadcast %426 : f32 to vector<16x16xf32>
    %428 = arith.mulf %122, %427 : vector<16x16xf32>
    %429 = arith.addf %425, %428 : vector<16x16xf32>
    %c2_209 = arith.constant 2 : index
    %430 = memref.load %arg1[%c2_209] : memref<36xf32, #tpu.memory_space<smem>>
    %431 = vector.broadcast %430 : f32 to vector<16x16xf32>
    %432 = arith.mulf %128, %431 : vector<16x16xf32>
    %433 = arith.addf %429, %432 : vector<16x16xf32>
    %c11_210 = arith.constant 11 : index
    %434 = memref.load %arg1[%c11_210] : memref<36xf32, #tpu.memory_space<smem>>
    %435 = vector.broadcast %434 : f32 to vector<16x16xf32>
    %436 = arith.mulf %134, %435 : vector<16x16xf32>
    %437 = arith.addf %433, %436 : vector<16x16xf32>
    %c20_211 = arith.constant 20 : index
    %438 = memref.load %arg1[%c20_211] : memref<36xf32, #tpu.memory_space<smem>>
    %439 = vector.broadcast %438 : f32 to vector<16x16xf32>
    %440 = arith.mulf %140, %439 : vector<16x16xf32>
    %441 = arith.addf %437, %440 : vector<16x16xf32>
    %c29_212 = arith.constant 29 : index
    %442 = memref.load %arg1[%c29_212] : memref<36xf32, #tpu.memory_space<smem>>
    %443 = vector.broadcast %442 : f32 to vector<16x16xf32>
    %444 = arith.mulf %146, %443 : vector<16x16xf32>
    %445 = arith.addf %441, %444 : vector<16x16xf32>
    %c3_213 = arith.constant 3 : index
    %446 = memref.load %arg1[%c3_213] : memref<36xf32, #tpu.memory_space<smem>>
    %447 = vector.broadcast %446 : f32 to vector<16x16xf32>
    %448 = arith.mulf %152, %447 : vector<16x16xf32>
    %449 = arith.addf %445, %448 : vector<16x16xf32>
    %c12_214 = arith.constant 12 : index
    %450 = memref.load %arg1[%c12_214] : memref<36xf32, #tpu.memory_space<smem>>
    %451 = vector.broadcast %450 : f32 to vector<16x16xf32>
    %452 = arith.mulf %158, %451 : vector<16x16xf32>
    %453 = arith.addf %449, %452 : vector<16x16xf32>
    %c21_215 = arith.constant 21 : index
    %454 = memref.load %arg1[%c21_215] : memref<36xf32, #tpu.memory_space<smem>>
    %455 = vector.broadcast %454 : f32 to vector<16x16xf32>
    %456 = arith.mulf %164, %455 : vector<16x16xf32>
    %457 = arith.addf %453, %456 : vector<16x16xf32>
    %c30_216 = arith.constant 30 : index
    %458 = memref.load %arg1[%c30_216] : memref<36xf32, #tpu.memory_space<smem>>
    %459 = vector.broadcast %458 : f32 to vector<16x16xf32>
    %460 = arith.mulf %170, %459 : vector<16x16xf32>
    %461 = arith.addf %457, %460 : vector<16x16xf32>
    %c4_217 = arith.constant 4 : index
    %462 = memref.load %arg1[%c4_217] : memref<36xf32, #tpu.memory_space<smem>>
    %463 = vector.broadcast %462 : f32 to vector<16x16xf32>
    %464 = arith.mulf %176, %463 : vector<16x16xf32>
    %465 = arith.addf %461, %464 : vector<16x16xf32>
    %c13_218 = arith.constant 13 : index
    %466 = memref.load %arg1[%c13_218] : memref<36xf32, #tpu.memory_space<smem>>
    %467 = vector.broadcast %466 : f32 to vector<16x16xf32>
    %468 = arith.mulf %182, %467 : vector<16x16xf32>
    %469 = arith.addf %465, %468 : vector<16x16xf32>
    %c22_219 = arith.constant 22 : index
    %470 = memref.load %arg1[%c22_219] : memref<36xf32, #tpu.memory_space<smem>>
    %471 = vector.broadcast %470 : f32 to vector<16x16xf32>
    %472 = arith.mulf %188, %471 : vector<16x16xf32>
    %473 = arith.addf %469, %472 : vector<16x16xf32>
    %c31_220 = arith.constant 31 : index
    %474 = memref.load %arg1[%c31_220] : memref<36xf32, #tpu.memory_space<smem>>
    %475 = vector.broadcast %474 : f32 to vector<16x16xf32>
    %476 = arith.mulf %194, %475 : vector<16x16xf32>
    %477 = arith.addf %473, %476 : vector<16x16xf32>
    %c5_221 = arith.constant 5 : index
    %478 = memref.load %arg1[%c5_221] : memref<36xf32, #tpu.memory_space<smem>>
    %479 = vector.broadcast %478 : f32 to vector<16x16xf32>
    %480 = arith.mulf %200, %479 : vector<16x16xf32>
    %481 = arith.addf %477, %480 : vector<16x16xf32>
    %c14_222 = arith.constant 14 : index
    %482 = memref.load %arg1[%c14_222] : memref<36xf32, #tpu.memory_space<smem>>
    %483 = vector.broadcast %482 : f32 to vector<16x16xf32>
    %484 = arith.mulf %206, %483 : vector<16x16xf32>
    %485 = arith.addf %481, %484 : vector<16x16xf32>
    %c23_223 = arith.constant 23 : index
    %486 = memref.load %arg1[%c23_223] : memref<36xf32, #tpu.memory_space<smem>>
    %487 = vector.broadcast %486 : f32 to vector<16x16xf32>
    %488 = arith.mulf %212, %487 : vector<16x16xf32>
    %489 = arith.addf %485, %488 : vector<16x16xf32>
    %c32_224 = arith.constant 32 : index
    %490 = memref.load %arg1[%c32_224] : memref<36xf32, #tpu.memory_space<smem>>
    %491 = vector.broadcast %490 : f32 to vector<16x16xf32>
    %492 = arith.mulf %218, %491 : vector<16x16xf32>
    %493 = arith.addf %489, %492 : vector<16x16xf32>
    %c6_225 = arith.constant 6 : index
    %494 = memref.load %arg1[%c6_225] : memref<36xf32, #tpu.memory_space<smem>>
    %c1_226 = arith.constant 1 : index
    %c2_227 = arith.constant 2 : index
    %c0_228 = arith.constant 0 : index
    %495 = vector.load %arg4[%c1_226, %c2_227, %c0_228] : memref<16x18x18xf32, #tpu.memory_space<vmem>>, vector<1x16x16xf32>
    %496 = vector.shape_cast %495 : vector<1x16x16xf32> to vector<16x16xf32>
    %497 = vector.broadcast %494 : f32 to vector<16x16xf32>
    %498 = arith.mulf %496, %497 : vector<16x16xf32>
    %499 = arith.addf %493, %498 : vector<16x16xf32>
    %c15_229 = arith.constant 15 : index
    %500 = memref.load %arg1[%c15_229] : memref<36xf32, #tpu.memory_space<smem>>
    %c5_230 = arith.constant 5 : index
    %c2_231 = arith.constant 2 : index
    %c0_232 = arith.constant 0 : index
    %501 = vector.load %arg4[%c5_230, %c2_231, %c0_232] : memref<16x18x18xf32, #tpu.memory_space<vmem>>, vector<1x16x16xf32>
    %502 = vector.shape_cast %501 : vector<1x16x16xf32> to vector<16x16xf32>
    %503 = vector.broadcast %500 : f32 to vector<16x16xf32>
    %504 = arith.mulf %502, %503 : vector<16x16xf32>
    %505 = arith.addf %499, %504 : vector<16x16xf32>
    %c24_233 = arith.constant 24 : index
    %506 = memref.load %arg1[%c24_233] : memref<36xf32, #tpu.memory_space<smem>>
    %c9_234 = arith.constant 9 : index
    %c2_235 = arith.constant 2 : index
    %c0_236 = arith.constant 0 : index
    %507 = vector.load %arg4[%c9_234, %c2_235, %c0_236] : memref<16x18x18xf32, #tpu.memory_space<vmem>>, vector<1x16x16xf32>
    %508 = vector.shape_cast %507 : vector<1x16x16xf32> to vector<16x16xf32>
    %509 = vector.broadcast %506 : f32 to vector<16x16xf32>
    %510 = arith.mulf %508, %509 : vector<16x16xf32>
    %511 = arith.addf %505, %510 : vector<16x16xf32>
    %c33_237 = arith.constant 33 : index
    %512 = memref.load %arg1[%c33_237] : memref<36xf32, #tpu.memory_space<smem>>
    %c13_238 = arith.constant 13 : index
    %c2_239 = arith.constant 2 : index
    %c0_240 = arith.constant 0 : index
    %513 = vector.load %arg4[%c13_238, %c2_239, %c0_240] : memref<16x18x18xf32, #tpu.memory_space<vmem>>, vector<1x16x16xf32>
    %514 = vector.shape_cast %513 : vector<1x16x16xf32> to vector<16x16xf32>
    %515 = vector.broadcast %512 : f32 to vector<16x16xf32>
    %516 = arith.mulf %514, %515 : vector<16x16xf32>
    %517 = arith.addf %511, %516 : vector<16x16xf32>
    %c7_241 = arith.constant 7 : index
    %518 = memref.load %arg1[%c7_241] : memref<36xf32, #tpu.memory_space<smem>>
    %c0_242 = arith.constant 0 : index
    %c2_243 = arith.constant 2 : index
    %c1_244 = arith.constant 1 : index
    %519 = vector.load %arg4[%c0_242, %c2_243, %c1_244] : memref<16x18x18xf32, #tpu.memory_space<vmem>>, vector<1x16x16xf32>
    %520 = vector.shape_cast %519 : vector<1x16x16xf32> to vector<16x16xf32>
    %521 = vector.broadcast %518 : f32 to vector<16x16xf32>
    %522 = arith.mulf %520, %521 : vector<16x16xf32>
    %523 = arith.addf %517, %522 : vector<16x16xf32>
    %c16_245 = arith.constant 16 : index
    %524 = memref.load %arg1[%c16_245] : memref<36xf32, #tpu.memory_space<smem>>
    %c4_246 = arith.constant 4 : index
    %c2_247 = arith.constant 2 : index
    %c1_248 = arith.constant 1 : index
    %525 = vector.load %arg4[%c4_246, %c2_247, %c1_248] : memref<16x18x18xf32, #tpu.memory_space<vmem>>, vector<1x16x16xf32>
    %526 = vector.shape_cast %525 : vector<1x16x16xf32> to vector<16x16xf32>
    %527 = vector.broadcast %524 : f32 to vector<16x16xf32>
    %528 = arith.mulf %526, %527 : vector<16x16xf32>
    %529 = arith.addf %523, %528 : vector<16x16xf32>
    %c25_249 = arith.constant 25 : index
    %530 = memref.load %arg1[%c25_249] : memref<36xf32, #tpu.memory_space<smem>>
    %c8_250 = arith.constant 8 : index
    %c2_251 = arith.constant 2 : index
    %c1_252 = arith.constant 1 : index
    %531 = vector.load %arg4[%c8_250, %c2_251, %c1_252] : memref<16x18x18xf32, #tpu.memory_space<vmem>>, vector<1x16x16xf32>
    %532 = vector.shape_cast %531 : vector<1x16x16xf32> to vector<16x16xf32>
    %533 = vector.broadcast %530 : f32 to vector<16x16xf32>
    %534 = arith.mulf %532, %533 : vector<16x16xf32>
    %535 = arith.addf %529, %534 : vector<16x16xf32>
    %c34_253 = arith.constant 34 : index
    %536 = memref.load %arg1[%c34_253] : memref<36xf32, #tpu.memory_space<smem>>
    %c12_254 = arith.constant 12 : index
    %c2_255 = arith.constant 2 : index
    %c1_256 = arith.constant 1 : index
    %537 = vector.load %arg4[%c12_254, %c2_255, %c1_256] : memref<16x18x18xf32, #tpu.memory_space<vmem>>, vector<1x16x16xf32>
    %538 = vector.shape_cast %537 : vector<1x16x16xf32> to vector<16x16xf32>
    %539 = vector.broadcast %536 : f32 to vector<16x16xf32>
    %540 = arith.mulf %538, %539 : vector<16x16xf32>
    %541 = arith.addf %535, %540 : vector<16x16xf32>
    %c8_257 = arith.constant 8 : index
    %542 = memref.load %arg1[%c8_257] : memref<36xf32, #tpu.memory_space<smem>>
    %c1_258 = arith.constant 1 : index
    %c2_259 = arith.constant 2 : index
    %c1_260 = arith.constant 1 : index
    %543 = vector.load %arg4[%c1_258, %c2_259, %c1_260] : memref<16x18x18xf32, #tpu.memory_space<vmem>>, vector<1x16x16xf32>
    %544 = vector.shape_cast %543 : vector<1x16x16xf32> to vector<16x16xf32>
    %545 = vector.broadcast %542 : f32 to vector<16x16xf32>
    %546 = arith.mulf %544, %545 : vector<16x16xf32>
    %547 = arith.addf %541, %546 : vector<16x16xf32>
    %c17_261 = arith.constant 17 : index
    %548 = memref.load %arg1[%c17_261] : memref<36xf32, #tpu.memory_space<smem>>
    %c5_262 = arith.constant 5 : index
    %c2_263 = arith.constant 2 : index
    %c1_264 = arith.constant 1 : index
    %549 = vector.load %arg4[%c5_262, %c2_263, %c1_264] : memref<16x18x18xf32, #tpu.memory_space<vmem>>, vector<1x16x16xf32>
    %550 = vector.shape_cast %549 : vector<1x16x16xf32> to vector<16x16xf32>
    %551 = vector.broadcast %548 : f32 to vector<16x16xf32>
    %552 = arith.mulf %550, %551 : vector<16x16xf32>
    %553 = arith.addf %547, %552 : vector<16x16xf32>
    %c26_265 = arith.constant 26 : index
    %554 = memref.load %arg1[%c26_265] : memref<36xf32, #tpu.memory_space<smem>>
    %c9_266 = arith.constant 9 : index
    %c2_267 = arith.constant 2 : index
    %c1_268 = arith.constant 1 : index
    %555 = vector.load %arg4[%c9_266, %c2_267, %c1_268] : memref<16x18x18xf32, #tpu.memory_space<vmem>>, vector<1x16x16xf32>
    %556 = vector.shape_cast %555 : vector<1x16x16xf32> to vector<16x16xf32>
    %557 = vector.broadcast %554 : f32 to vector<16x16xf32>
    %558 = arith.mulf %556, %557 : vector<16x16xf32>
    %559 = arith.addf %553, %558 : vector<16x16xf32>
    %c35_269 = arith.constant 35 : index
    %560 = memref.load %arg1[%c35_269] : memref<36xf32, #tpu.memory_space<smem>>
    %c13_270 = arith.constant 13 : index
    %c2_271 = arith.constant 2 : index
    %c1_272 = arith.constant 1 : index
    %561 = vector.load %arg4[%c13_270, %c2_271, %c1_272] : memref<16x18x18xf32, #tpu.memory_space<vmem>>, vector<1x16x16xf32>
    %562 = vector.shape_cast %561 : vector<1x16x16xf32> to vector<16x16xf32>
    %563 = vector.broadcast %560 : f32 to vector<16x16xf32>
    %564 = arith.mulf %562, %563 : vector<16x16xf32>
    %565 = arith.addf %559, %564 : vector<16x16xf32>
    %c0_273 = arith.constant 0 : index
    %c2_274 = arith.constant 2 : index
    %c0_275 = arith.constant 0 : index
    %c0_276 = arith.constant 0 : index
    %566 = vector.load %arg3[%c0_273, %c2_274, %c0_275, %c0_276] : memref<1x4x16x16xf32, #tpu.memory_space<vmem>>, vector<1x1x16x16xf32>
    %567 = vector.shape_cast %566 : vector<1x1x16x16xf32> to vector<16x16xf32>
    %568 = vector.shape_cast %565 : vector<16x16xf32> to vector<1x1x16x16xf32>
    tpu.vector_store %arg3[%c0_273, %c2_274, %c0_275, %c0_276], %568 {strides = array<i32>} : memref<1x4x16x16xf32, #tpu.memory_space<vmem>>, vector<1x1x16x16xf32>,
    %cst_277 = arith.constant 0.000000e+00 : f32
    %569 = vector.broadcast %cst_277 : f32 to vector<16x16xf32>
    %c0_278 = arith.constant 0 : index
    %570 = memref.load %arg1[%c0_278] : memref<36xf32, #tpu.memory_space<smem>>
    %571 = vector.broadcast %570 : f32 to vector<16x16xf32>
    %572 = arith.mulf %104, %571 : vector<16x16xf32>
    %573 = arith.addf %569, %572 : vector<16x16xf32>
    %c9_279 = arith.constant 9 : index
    %574 = memref.load %arg1[%c9_279] : memref<36xf32, #tpu.memory_space<smem>>
    %575 = vector.broadcast %574 : f32 to vector<16x16xf32>
    %576 = arith.mulf %110, %575 : vector<16x16xf32>
    %577 = arith.addf %573, %576 : vector<16x16xf32>
    %c18_280 = arith.constant 18 : index
    %578 = memref.load %arg1[%c18_280] : memref<36xf32, #tpu.memory_space<smem>>
    %579 = vector.broadcast %578 : f32 to vector<16x16xf32>
    %580 = arith.mulf %116, %579 : vector<16x16xf32>
    %581 = arith.addf %577, %580 : vector<16x16xf32>
    %c27_281 = arith.constant 27 : index
    %582 = memref.load %arg1[%c27_281] : memref<36xf32, #tpu.memory_space<smem>>
    %583 = vector.broadcast %582 : f32 to vector<16x16xf32>
    %584 = arith.mulf %122, %583 : vector<16x16xf32>
    %585 = arith.addf %581, %584 : vector<16x16xf32>
    %c1_282 = arith.constant 1 : index
    %586 = memref.load %arg1[%c1_282] : memref<36xf32, #tpu.memory_space<smem>>
    %587 = vector.broadcast %586 : f32 to vector<16x16xf32>
    %588 = arith.mulf %128, %587 : vector<16x16xf32>
    %589 = arith.addf %585, %588 : vector<16x16xf32>
    %c10_283 = arith.constant 10 : index
    %590 = memref.load %arg1[%c10_283] : memref<36xf32, #tpu.memory_space<smem>>
    %591 = vector.broadcast %590 : f32 to vector<16x16xf32>
    %592 = arith.mulf %134, %591 : vector<16x16xf32>
    %593 = arith.addf %589, %592 : vector<16x16xf32>
    %c19_284 = arith.constant 19 : index
    %594 = memref.load %arg1[%c19_284] : memref<36xf32, #tpu.memory_space<smem>>
    %595 = vector.broadcast %594 : f32 to vector<16x16xf32>
    %596 = arith.mulf %140, %595 : vector<16x16xf32>
    %597 = arith.addf %593, %596 : vector<16x16xf32>
    %c28_285 = arith.constant 28 : index
    %598 = memref.load %arg1[%c28_285] : memref<36xf32, #tpu.memory_space<smem>>
    %599 = vector.broadcast %598 : f32 to vector<16x16xf32>
    %600 = arith.mulf %146, %599 : vector<16x16xf32>
    %601 = arith.addf %597, %600 : vector<16x16xf32>
    %c2_286 = arith.constant 2 : index
    %602 = memref.load %arg1[%c2_286] : memref<36xf32, #tpu.memory_space<smem>>
    %603 = vector.broadcast %602 : f32 to vector<16x16xf32>
    %604 = arith.mulf %316, %603 : vector<16x16xf32>
    %605 = arith.addf %601, %604 : vector<16x16xf32>
    %c11_287 = arith.constant 11 : index
    %606 = memref.load %arg1[%c11_287] : memref<36xf32, #tpu.memory_space<smem>>
    %607 = vector.broadcast %606 : f32 to vector<16x16xf32>
    %608 = arith.mulf %322, %607 : vector<16x16xf32>
    %609 = arith.addf %605, %608 : vector<16x16xf32>
    %c20_288 = arith.constant 20 : index
    %610 = memref.load %arg1[%c20_288] : memref<36xf32, #tpu.memory_space<smem>>
    %611 = vector.broadcast %610 : f32 to vector<16x16xf32>
    %612 = arith.mulf %328, %611 : vector<16x16xf32>
    %613 = arith.addf %609, %612 : vector<16x16xf32>
    %c29_289 = arith.constant 29 : index
    %614 = memref.load %arg1[%c29_289] : memref<36xf32, #tpu.memory_space<smem>>
    %615 = vector.broadcast %614 : f32 to vector<16x16xf32>
    %616 = arith.mulf %334, %615 : vector<16x16xf32>
    %617 = arith.addf %613, %616 : vector<16x16xf32>
    %c3_290 = arith.constant 3 : index
    %618 = memref.load %arg1[%c3_290] : memref<36xf32, #tpu.memory_space<smem>>
    %619 = vector.broadcast %618 : f32 to vector<16x16xf32>
    %620 = arith.mulf %176, %619 : vector<16x16xf32>
    %621 = arith.addf %617, %620 : vector<16x16xf32>
    %c12_291 = arith.constant 12 : index
    %622 = memref.load %arg1[%c12_291] : memref<36xf32, #tpu.memory_space<smem>>
    %623 = vector.broadcast %622 : f32 to vector<16x16xf32>
    %624 = arith.mulf %182, %623 : vector<16x16xf32>
    %625 = arith.addf %621, %624 : vector<16x16xf32>
    %c21_292 = arith.constant 21 : index
    %626 = memref.load %arg1[%c21_292] : memref<36xf32, #tpu.memory_space<smem>>
    %627 = vector.broadcast %626 : f32 to vector<16x16xf32>
    %628 = arith.mulf %188, %627 : vector<16x16xf32>
    %629 = arith.addf %625, %628 : vector<16x16xf32>
    %c30_293 = arith.constant 30 : index
    %630 = memref.load %arg1[%c30_293] : memref<36xf32, #tpu.memory_space<smem>>
    %631 = vector.broadcast %630 : f32 to vector<16x16xf32>
    %632 = arith.mulf %194, %631 : vector<16x16xf32>
    %633 = arith.addf %629, %632 : vector<16x16xf32>
    %c4_294 = arith.constant 4 : index
    %634 = memref.load %arg1[%c4_294] : memref<36xf32, #tpu.memory_space<smem>>
    %635 = vector.broadcast %634 : f32 to vector<16x16xf32>
    %636 = arith.mulf %200, %635 : vector<16x16xf32>
    %637 = arith.addf %633, %636 : vector<16x16xf32>
    %c13_295 = arith.constant 13 : index
    %638 = memref.load %arg1[%c13_295] : memref<36xf32, #tpu.memory_space<smem>>
    %639 = vector.broadcast %638 : f32 to vector<16x16xf32>
    %640 = arith.mulf %206, %639 : vector<16x16xf32>
    %641 = arith.addf %637, %640 : vector<16x16xf32>
    %c22_296 = arith.constant 22 : index
    %642 = memref.load %arg1[%c22_296] : memref<36xf32, #tpu.memory_space<smem>>
    %643 = vector.broadcast %642 : f32 to vector<16x16xf32>
    %644 = arith.mulf %212, %643 : vector<16x16xf32>
    %645 = arith.addf %641, %644 : vector<16x16xf32>
    %c31_297 = arith.constant 31 : index
    %646 = memref.load %arg1[%c31_297] : memref<36xf32, #tpu.memory_space<smem>>
    %647 = vector.broadcast %646 : f32 to vector<16x16xf32>
    %648 = arith.mulf %218, %647 : vector<16x16xf32>
    %649 = arith.addf %645, %648 : vector<16x16xf32>
    %c5_298 = arith.constant 5 : index
    %650 = memref.load %arg1[%c5_298] : memref<36xf32, #tpu.memory_space<smem>>
    %651 = vector.broadcast %650 : f32 to vector<16x16xf32>
    %652 = arith.mulf %372, %651 : vector<16x16xf32>
    %653 = arith.addf %649, %652 : vector<16x16xf32>
    %c14_299 = arith.constant 14 : index
    %654 = memref.load %arg1[%c14_299] : memref<36xf32, #tpu.memory_space<smem>>
    %655 = vector.broadcast %654 : f32 to vector<16x16xf32>
    %656 = arith.mulf %378, %655 : vector<16x16xf32>
    %657 = arith.addf %653, %656 : vector<16x16xf32>
    %c23_300 = arith.constant 23 : index
    %658 = memref.load %arg1[%c23_300] : memref<36xf32, #tpu.memory_space<smem>>
    %659 = vector.broadcast %658 : f32 to vector<16x16xf32>
    %660 = arith.mulf %384, %659 : vector<16x16xf32>
    %661 = arith.addf %657, %660 : vector<16x16xf32>
    %c32_301 = arith.constant 32 : index
    %662 = memref.load %arg1[%c32_301] : memref<36xf32, #tpu.memory_space<smem>>
    %663 = vector.broadcast %662 : f32 to vector<16x16xf32>
    %664 = arith.mulf %390, %663 : vector<16x16xf32>
    %665 = arith.addf %661, %664 : vector<16x16xf32>
    %c6_302 = arith.constant 6 : index
    %666 = memref.load %arg1[%c6_302] : memref<36xf32, #tpu.memory_space<smem>>
    %667 = vector.broadcast %666 : f32 to vector<16x16xf32>
    %668 = arith.mulf %520, %667 : vector<16x16xf32>
    %669 = arith.addf %665, %668 : vector<16x16xf32>
    %c15_303 = arith.constant 15 : index
    %670 = memref.load %arg1[%c15_303] : memref<36xf32, #tpu.memory_space<smem>>
    %671 = vector.broadcast %670 : f32 to vector<16x16xf32>
    %672 = arith.mulf %526, %671 : vector<16x16xf32>
    %673 = arith.addf %669, %672 : vector<16x16xf32>
    %c24_304 = arith.constant 24 : index
    %674 = memref.load %arg1[%c24_304] : memref<36xf32, #tpu.memory_space<smem>>
    %675 = vector.broadcast %674 : f32 to vector<16x16xf32>
    %676 = arith.mulf %532, %675 : vector<16x16xf32>
    %677 = arith.addf %673, %676 : vector<16x16xf32>
    %c33_305 = arith.constant 33 : index
    %678 = memref.load %arg1[%c33_305] : memref<36xf32, #tpu.memory_space<smem>>
    %679 = vector.broadcast %678 : f32 to vector<16x16xf32>
    %680 = arith.mulf %538, %679 : vector<16x16xf32>
    %681 = arith.addf %677, %680 : vector<16x16xf32>
    %c7_306 = arith.constant 7 : index
    %682 = memref.load %arg1[%c7_306] : memref<36xf32, #tpu.memory_space<smem>>
    %683 = vector.broadcast %682 : f32 to vector<16x16xf32>
    %684 = arith.mulf %544, %683 : vector<16x16xf32>
    %685 = arith.addf %681, %684 : vector<16x16xf32>
    %c16_307 = arith.constant 16 : index
    %686 = memref.load %arg1[%c16_307] : memref<36xf32, #tpu.memory_space<smem>>
    %687 = vector.broadcast %686 : f32 to vector<16x16xf32>
    %688 = arith.mulf %550, %687 : vector<16x16xf32>
    %689 = arith.addf %685, %688 : vector<16x16xf32>
    %c25_308 = arith.constant 25 : index
    %690 = memref.load %arg1[%c25_308] : memref<36xf32, #tpu.memory_space<smem>>
    %691 = vector.broadcast %690 : f32 to vector<16x16xf32>
    %692 = arith.mulf %556, %691 : vector<16x16xf32>
    %693 = arith.addf %689, %692 : vector<16x16xf32>
    %c34_309 = arith.constant 34 : index
    %694 = memref.load %arg1[%c34_309] : memref<36xf32, #tpu.memory_space<smem>>
    %695 = vector.broadcast %694 : f32 to vector<16x16xf32>
    %696 = arith.mulf %562, %695 : vector<16x16xf32>
    %697 = arith.addf %693, %696 : vector<16x16xf32>
    %c8_310 = arith.constant 8 : index
    %698 = memref.load %arg1[%c8_310] : memref<36xf32, #tpu.memory_space<smem>>
    %c0_311 = arith.constant 0 : index
    %c2_312 = arith.constant 2 : index
    %c2_313 = arith.constant 2 : index
    %699 = vector.load %arg4[%c0_311, %c2_312, %c2_313] : memref<16x18x18xf32, #tpu.memory_space<vmem>>, vector<1x16x16xf32>
    %700 = vector.shape_cast %699 : vector<1x16x16xf32> to vector<16x16xf32>
    %701 = vector.broadcast %698 : f32 to vector<16x16xf32>
    %702 = arith.mulf %700, %701 : vector<16x16xf32>
    %703 = arith.addf %697, %702 : vector<16x16xf32>
    %c17_314 = arith.constant 17 : index
    %704 = memref.load %arg1[%c17_314] : memref<36xf32, #tpu.memory_space<smem>>
    %c4_315 = arith.constant 4 : index
    %c2_316 = arith.constant 2 : index
    %c2_317 = arith.constant 2 : index
    %705 = vector.load %arg4[%c4_315, %c2_316, %c2_317] : memref<16x18x18xf32, #tpu.memory_space<vmem>>, vector<1x16x16xf32>
    %706 = vector.shape_cast %705 : vector<1x16x16xf32> to vector<16x16xf32>
    %707 = vector.broadcast %704 : f32 to vector<16x16xf32>
    %708 = arith.mulf %706, %707 : vector<16x16xf32>
    %709 = arith.addf %703, %708 : vector<16x16xf32>
    %c26_318 = arith.constant 26 : index
    %710 = memref.load %arg1[%c26_318] : memref<36xf32, #tpu.memory_space<smem>>
    %c8_319 = arith.constant 8 : index
    %c2_320 = arith.constant 2 : index
    %c2_321 = arith.constant 2 : index
    %711 = vector.load %arg4[%c8_319, %c2_320, %c2_321] : memref<16x18x18xf32, #tpu.memory_space<vmem>>, vector<1x16x16xf32>
    %712 = vector.shape_cast %711 : vector<1x16x16xf32> to vector<16x16xf32>
    %713 = vector.broadcast %710 : f32 to vector<16x16xf32>
    %714 = arith.mulf %712, %713 : vector<16x16xf32>
    %715 = arith.addf %709, %714 : vector<16x16xf32>
    %c35_322 = arith.constant 35 : index
    %716 = memref.load %arg1[%c35_322] : memref<36xf32, #tpu.memory_space<smem>>
    %c12_323 = arith.constant 12 : index
    %c2_324 = arith.constant 2 : index
    %c2_325 = arith.constant 2 : index
    %717 = vector.load %arg4[%c12_323, %c2_324, %c2_325] : memref<16x18x18xf32, #tpu.memory_space<vmem>>, vector<1x16x16xf32>
    %718 = vector.shape_cast %717 : vector<1x16x16xf32> to vector<16x16xf32>
    %719 = vector.broadcast %716 : f32 to vector<16x16xf32>
    %720 = arith.mulf %718, %719 : vector<16x16xf32>
    %721 = arith.addf %715, %720 : vector<16x16xf32>
    %c0_326 = arith.constant 0 : index
    %c3_327 = arith.constant 3 : index
    %c0_328 = arith.constant 0 : index
    %c0_329 = arith.constant 0 : index
    %722 = vector.load %arg3[%c0_326, %c3_327, %c0_328, %c0_329] : memref<1x4x16x16xf32, #tpu.memory_space<vmem>>, vector<1x1x16x16xf32>
    %723 = vector.shape_cast %722 : vector<1x1x16x16xf32> to vector<16x16xf32>
    %724 = vector.shape_cast %721 : vector<16x16xf32> to vector<1x1x16x16xf32>
    tpu.vector_store %arg3[%c0_326, %c3_327, %c0_328, %c0_329], %724 {strides = array<i32>} : memref<1x4x16x16xf32, #tpu.memory_space<vmem>>, vector<1x1x16x16xf32>,
    return
  }
  func.func @transform_0(%arg0: i32) -> i32 {
    %c0_i32 = arith.constant 0 : i32
    %c0_i32_0 = arith.constant 0 : i32
    return %c0_i32 : i32
  }
  func.func @transform_1(%arg0: i32) -> (i32, i32, i32, i32) {
    %c0_i32 = arith.constant 0 : i32
    %c0_i32_0 = arith.constant 0 : i32
    %c0_i32_1 = arith.constant 0 : i32
    %c0_i32_2 = arith.constant 0 : i32
    return %arg0, %c0_i32, %c0_i32_0, %c0_i32_1 : i32, i32, i32, i32
  }
  func.func @transform_2(%arg0: i32) -> (i32, i32, i32, i32) {
    %c0_i32 = arith.constant 0 : i32
    %c0_i32_0 = arith.constant 0 : i32
    %c0_i32_1 = arith.constant 0 : i32
    %c0_i32_2 = arith.constant 0 : i32
    return %arg0, %c0_i32, %c0_i32_0, %c0_i32_1 : i32, i32, i32, i32
  }
}

</mosaic_0001>

<llo_original>
// kernel: restruct_forward.1
$region0: #{restruct_forward.1}
  #allocation0 [shape = 'u32[]', space=smem, size = 0x4, offset = 0x4, fixed_abs, tag = 'smem constant byte address 0x4 - core index']
  #allocation1 [shape = 'u32[144,128]{1,0:T(1,128)}', space=vmem, size = 0x12000, scoped, tag = 'internal scratch']
  #allocation2 [shape = 'f32[16,18,18]{2,1,0:T(8,128)}', space=vmem, size = 0x30000, scoped, tag = 'scratch operand']
  %s0 = inlined_call_operand.vmem [shape: f32[36], index: 0, kind: input, shape index: {}]
  %s1 = inlined_call_operand.hbm [shape: f32[2,16,16,16], index: 1, kind: input, shape index: {}]
  %s2 = inlined_call_operand.vmem [shape: f32[2,4,16,16], index: 2, kind: output, shape index: {}]
  %s3 = sld [smem:[#allocation0]]
  $region49: #{restruct_forward.1} parent=0
    _
  %s5 = ssub.s32 1, %s3
  %s6 = scalar_select 0, %s5, %s3
  $region1: #{restruct_forward.1} parent=0
    #allocation3 [shape = 'u8[512]{0}', space=smem, size = 0x200, scoped, tag = 'input window, operand 0, single buffered']
    #allocation4 [shape = 's32[2]{0}', space=sflag, size = 0x8, scoped, tag = 'scoped memory for restruct_forward.1']
    #allocation5 [shape = 's32[2]{0}', space=sflag, size = 0x8, scoped, tag = 'scoped memory for restruct_forward.1']
    #allocation6 [shape = 'u8[262144]{0}', space=vmem, size = 0x40000, scoped, tag = 'input window, operand 1']
    %7 = vsyncpa [#allocation5], 0
    %8 = vsyncpa [#allocation4], 0
    %s9 = scalar_lea.sflag [#allocation4], 1
    %10 = vsyncpa %s9, 0
    loop: start=0, step=1, limit=4
    $region2: #{restruct_forward.1} parent=1 // loop_pre_header
      _
    $region3: #{restruct_forward.1} parent=1 // loop_header
      %s12 = sphi 0, %s16
      %p13 = scmp.ge.s32.totalorder %s12, 4
      %s20 = sphi 0, %s20
      %s22 = sphi 0, %s20
      %s23 = sphi 0, %s22
      %s37 = sphi 0, %s23
      %s43 = sphi 0, %s45
      %s46 = sphi 0, %s43
      %s47 = sphi 0, %s46
      %s63 = sphi 0, %s47
      %s69 = sphi 0, %s71
      %s72 = sphi 0, %s69
      %s73 = sphi 0, %s72
      %s89 = sphi 0, %s73
    $region4: #{restruct_forward.1} parent=1 // loop_header_branch
      %15 = sbr.rel (%p13) target = $region8
    $region5: #{restruct_forward.1} parent=1 // loop_body
      %s17 = ssub.s32 %s12, 1
      %s18 = ssub.s32 %s12, 2
      %s19 = sadd.s32 %s12, 1
      %s21 = sadd.s32 %s20, 1
      %p24 = scmp.eq.s32.totalorder %s12, 1
      %p25 = scmp.ne.s32.totalorder %s20, %s22
      %p26 = scmp.eq.s32.totalorder %s12, 0
      %p27 = por %p25, %p26
      %p28 = scmp.ne.s32.totalorder %s20, %s22
      %p29 = scmp.eq.s32.totalorder %s17, 1
      %p30 = por %p28, %p29
      %p31 = scmp.ne.s32.totalorder %s22, %s23
      %p32 = scmp.eq.s32.totalorder %s17, 0
      %p33 = por %p31, %p32
      %p34 = scmp.ne.s32.totalorder %s22, %s23
      %p35 = scmp.eq.s32.totalorder %s18, 1
      %p36 = por %p34, %p35
      %p38 = scmp.ne.s32.totalorder %s23, %s37
      %p39 = scmp.eq.s32.totalorder %s18, 0
      %p40 = por %p38, %p39
      %s41 = ssub.s32 %s12, %s19
      %p42 = scmp.eq.s32.totalorder %s41, 0
      %s44 = sadd.s32 %s43, 1
      %s45 = scalar_select %p42, %s43, %s44
      %p48 = pneg %p42
      %p49 = scmp.eq.s32.totalorder %s12, 1
      %p50 = por %p48, %p49
      %p51 = scmp.ne.s32.totalorder %s43, %s46
      %p52 = scmp.eq.s32.totalorder %s12, 0
      %p53 = por %p51, %p52
      %p54 = scmp.ne.s32.totalorder %s43, %s46
      %p55 = scmp.eq.s32.totalorder %s17, 1
      %p56 = por %p54, %p55
      %p57 = scmp.ne.s32.totalorder %s46, %s47
      %p58 = scmp.eq.s32.totalorder %s17, 0
      %p59 = por %p57, %p58
      %p60 = scmp.ne.s32.totalorder %s46, %s47
      %p61 = scmp.eq.s32.totalorder %s18, 1
      %p62 = por %p60, %p61
      %p64 = scmp.ne.s32.totalorder %s47, %s63
      %p65 = scmp.eq.s32.totalorder %s18, 0
      %p66 = por %p64, %p65
      %s67 = ssub.s32 %s12, %s19
      %p68 = scmp.eq.s32.totalorder %s67, 0
      %s70 = sadd.s32 %s69, 1
      %s71 = scalar_select %p68, %s69, %s70
      %p74 = pneg %p68
      %p75 = scmp.eq.s32.totalorder %s12, 1
      %p76 = por %p74, %p75
      %p77 = scmp.ne.s32.totalorder %s69, %s72
      %p78 = scmp.eq.s32.totalorder %s12, 0
      %p79 = por %p77, %p78
      %p80 = scmp.ne.s32.totalorder %s69, %s72
      %p81 = scmp.eq.s32.totalorder %s17, 1
      %p82 = por %p80, %p81
      %p83 = scmp.ne.s32.totalorder %s72, %s73
      %p84 = scmp.eq.s32.totalorder %s17, 0
      %p85 = por %p83, %p84
      %p86 = scmp.ne.s32.totalorder %s72, %s73
      %p87 = scmp.eq.s32.totalorder %s18, 1
      %p88 = por %p86, %p87
      %p90 = scmp.ne.s32.totalorder %s73, %s89
      %p91 = scmp.eq.s32.totalorder %s18, 0
      %p92 = por %p90, %p91
      %p93 = scmp.le.s32.totalorder 1, %s12
      %p94 = scmp.lt.s32.totalorder %s12, 3
      %p95 = pnand %p93, %p94
      %p96 = pneg %p95
      // Predicated region
      $region9: #{restruct_forward.1} parent=5 // pred_check
        _
      $region10: #{restruct_forward.1} parent=5 // pred_check_branch
        %98 = sbr.rel (%p95) target = $region12
      $region11: #{restruct_forward.1} parent=5 // pred_region
        %s99 = ssub.s32 %s12, 1
        // Predicated region
        $region13: #{restruct_forward.1} parent=11 // pred_check
          %p100 = pneg %p33
        $region14: #{restruct_forward.1} parent=11 // pred_check_branch
          %102 = sbr.rel (%p100) target = $region16
        $region15: #{restruct_forward.1} parent=11 // pred_region
          %s104 = ssub.s32 16, 16
          %105 = vsyncadd [#allocation5], %s104
          %s107 = sshll.u32 %s0, 4
          %s108 = int_to_ptr.vmem [resolvable:$true] %s107
          %110 = dma.vmem_to_smem %s108, 16, [#allocation3], [#allocation5]
        $region16: #{restruct_forward.1} parent=11 // pred_fallthru
          _
      $region12: #{restruct_forward.1} parent=5 // pred_fallthru
        _
      %p111 = scmp.lt.s32.totalorder %s12, 2
      // Predicated region
      $region17: #{restruct_forward.1} parent=5 // pred_check
        %p112 = pneg %p111
      $region18: #{restruct_forward.1} parent=5 // pred_check_branch
        %114 = sbr.rel (%p112) target = $region20
      $region19: #{restruct_forward.1} parent=5 // pred_region
        // Predicated region
        $region21: #{restruct_forward.1} parent=19 // pred_check
          %p115 = pneg %p53
        $region22: #{restruct_forward.1} parent=19 // pred_check_branch
          %117 = sbr.rel (%p115) target = $region24
        $region23: #{restruct_forward.1} parent=19 // pred_region
          %s118 = sand.u32 %s43, 1
          %s119 = scalar_lea.sflag [#allocation4], %s118
          %s120 = sand.u32 %s43, 1
          %s121 = smul.addr %s120, 256
          %s122 = scalar_lea.vmem [#allocation6], %s121
          %s124 = ssub.s32 4096, 4096
          %125 = vsyncadd %s119, %s124
          %s126 = smul.addr %s12, 32
          %s127 = smul.addr %s126, 128
          %s128 = scalar_lea.hbm %s1, %s127
          %s129 = sshll.u32 %s122, 4
          %s130 = int_to_ptr.vmem [resolvable:$true] %s129
          %135 = dma.hbm_to_vmem [thread:$0]  %s128, 4096, %s130, %s119, 128, 128, 8
        $region24: #{restruct_forward.1} parent=19 // pred_fallthru
          _
      $region20: #{restruct_forward.1} parent=5 // pred_fallthru
        _
      %p136 = scmp.le.s32.totalorder 1, %s12
      %p137 = scmp.lt.s32.totalorder %s12, 3
      %p138 = pnand %p136, %p137
      %p139 = pneg %p138
      // Predicated region
      $region25: #{restruct_forward.1} parent=5 // pred_check
        _
      $region26: #{restruct_forward.1} parent=5 // pred_check_branch
        %141 = sbr.rel (%p138) target = $region28
      $region27: #{restruct_forward.1} parent=5 // pred_region
        %s142 = ssub.s32 %s12, 1
        // Predicated region
        $region29: #{restruct_forward.1} parent=27 // pred_check
          %p143 = pneg %p33
        $region30: #{restruct_forward.1} parent=27 // pred_check_branch
          %145 = sbr.rel (%p143) target = $region32
        $region31: #{restruct_forward.1} parent=27 // pred_region
          %146 = dma.done [#allocation5], 16
        $region32: #{restruct_forward.1} parent=27 // pred_fallthru
          _
        %s147 = sand.u32 %s46, 1
        %s148 = scalar_lea.sflag [#allocation4], %s147
        %s149 = sand.u32 %s46, 1
        %s150 = smul.addr %s149, 256
        %s151 = scalar_lea.vmem [#allocation6], %s150
        // Predicated region
        $region33: #{restruct_forward.1} parent=27 // pred_check
          %p152 = pneg %p59
        $region34: #{restruct_forward.1} parent=27 // pred_check_branch
          %154 = sbr.rel (%p152) target = $region36
        $region35: #{restruct_forward.1} parent=27 // pred_region
          %155 = dma.done %s148, 4096
        $region36: #{restruct_forward.1} parent=27 // pred_fallthru
          _
        %156 = sfence
        %p157 = pneg %p33
        %p158 = pneg %p30
        %s159 = sand.u32 %s46, 1
        %s160 = scalar_lea.sflag [#allocation4], %s159
        %s161 = sand.u32 %s46, 1
        %s162 = smul.addr %s161, 256
        %s163 = scalar_lea.vmem [#allocation6], %s162
        %p164 = pneg %p59
        %p165 = pneg %p56
        %p166 = pneg %p85
        %p167 = pneg %p82
        %p168 = scmp.lt.s32.totalorder %s17, 1
        %s169 = scalar_select %p168, %s17, 1
        %s170 = smul.addr %s169, 8
        %s171 = smul.addr %s170, 8
        %s172 = scalar_lea.vmem %s2, %s171
        %p173 = scmp.lt.s32.totalorder %s17, 1
        %s174 = scalar_select %p173, %s17, 1
        %s175 = smul.addr %s174, 8
        %s176 = smul.addr %s175, 8
        %s177 = scalar_lea.vmem %s2, %s176
        %vm178 = vcmask 146432
        %179 = vst.msk [vmem:[#allocation2] sm:$0xff] %vm178, 0.0
        %180 = vst.msk [vmem:[#allocation2 + $0x8] sm:$0xff] %vm178, 0.0
        %vm181 = vcmask 140288
        %182 = vst.msk [vmem:[#allocation2 + $0x10] sm:$0x3] %vm181, 0.0
        %183 = vst.msk [vmem:[#allocation2 + $0x18] sm:$0xff] %vm178, 0.0
        %184 = vst.msk [vmem:[#allocation2 + $0x20] sm:$0xff] %vm178, 0.0
        %185 = vst.msk [vmem:[#allocation2 + $0x28] sm:$0x3] %vm181, 0.0
        %186 = vst.msk [vmem:[#allocation2 + $0x30] sm:$0xff] %vm178, 0.0
        %187 = vst.msk [vmem:[#allocation2 + $0x38] sm:$0xff] %vm178, 0.0
        %188 = vst.msk [vmem:[#allocation2 + $0x40] sm:$0x3] %vm181, 0.0
        %189 = vst.msk [vmem:[#allocation2 + $0x48] sm:$0xff] %vm178, 0.0
        %190 = vst.msk [vmem:[#allocation2 + $0x50] sm:$0xff] %vm178, 0.0
        %191 = vst.msk [vmem:[#allocation2 + $0x58] sm:$0x3] %vm181, 0.0
        %192 = vst.msk [vmem:[#allocation2 + $0x60] sm:$0xff] %vm178, 0.0
        %193 = vst.msk [vmem:[#allocation2 + $0x68] sm:$0xff] %vm178, 0.0
        %194 = vst.msk [vmem:[#allocation2 + $0x70] sm:$0x3] %vm181, 0.0
        %195 = vst.msk [vmem:[#allocation2 + $0x78] sm:$0xff] %vm178, 0.0
        %196 = vst.msk [vmem:[#allocation2 + $0x80] sm:$0xff] %vm178, 0.0
        %197 = vst.msk [vmem:[#allocation2 + $0x88] sm:$0x3] %vm181, 0.0
        %198 = vst.msk [vmem:[#allocation2 + $0x90] sm:$0xff] %vm178, 0.0
        %199 = vst.msk [vmem:[#allocation2 + $0x98] sm:$0xff] %vm178, 0.0
        %200 = vst.msk [vmem:[#allocation2 + $0xa0] sm:$0x3] %vm181, 0.0
        %201 = vst.msk [vmem:[#allocation2 + $0xa8] sm:$0xff] %vm178, 0.0
        %202 = vst.msk [vmem:[#allocation2 + $0xb0] sm:$0xff] %vm178, 0.0
        %203 = vst.msk [vmem:[#allocation2 + $0xb8] sm:$0x3] %vm181, 0.0
        %204 = vst.msk [vmem:[#allocation2 + $0xc0] sm:$0xff] %vm178, 0.0
        %205 = vst.msk [vmem:[#allocation2 + $0xc8] sm:$0xff] %vm178, 0.0
        %206 = vst.msk [vmem:[#allocation2 + $0xd0] sm:$0x3] %vm181, 0.0
        %207 = vst.msk [vmem:[#allocation2 + $0xd8] sm:$0xff] %vm178, 0.0
        %208 = vst.msk [vmem:[#allocation2 + $0xe0] sm:$0xff] %vm178, 0.0
        %209 = vst.msk [vmem:[#allocation2 + $0xe8] sm:$0x3] %vm181, 0.0
        %210 = vst.msk [vmem:[#allocation2 + $0xf0] sm:$0xff] %vm178, 0.0
        %211 = vst.msk [vmem:[#allocation2 + $0xf8] sm:$0xff] %vm178, 0.0
        %212 = vst.msk [vmem:[#allocation2 + $0x100] sm:$0x3] %vm181, 0.0
        %213 = vst.msk [vmem:[#allocation2 + $0x108] sm:$0xff] %vm178, 0.0
        %214 = vst.msk [vmem:[#allocation2 + $0x110] sm:$0xff] %vm178, 0.0
        %215 = vst.msk [vmem:[#allocation2 + $0x118] sm:$0x3] %vm181, 0.0
        %216 = vst.msk [vmem:[#allocation2 + $0x120] sm:$0xff] %vm178, 0.0
        %217 = vst.msk [vmem:[#allocation2 + $0x128] sm:$0xff] %vm178, 0.0
        %218 = vst.msk [vmem:[#allocation2 + $0x130] sm:$0x3] %vm181, 0.0
        %219 = vst.msk [vmem:[#allocation2 + $0x138] sm:$0xff] %vm178, 0.0
        %220 = vst.msk [vmem:[#allocation2 + $0x140] sm:$0xff] %vm178, 0.0
        %221 = vst.msk [vmem:[#allocation2 + $0x148] sm:$0x3] %vm181, 0.0
        %222 = vst.msk [vmem:[#allocation2 + $0x150] sm:$0xff] %vm178, 0.0
        %223 = vst.msk [vmem:[#allocation2 + $0x158] sm:$0xff] %vm178, 0.0
        %224 = vst.msk [vmem:[#allocation2 + $0x160] sm:$0x3] %vm181, 0.0
        %225 = vst.msk [vmem:[#allocation2 + $0x168] sm:$0xff] %vm178, 0.0
        %226 = vst.msk [vmem:[#allocation2 + $0x170] sm:$0xff] %vm178, 0.0
        %227 = vst.msk [vmem:[#allocation2 + $0x178] sm:$0x3] %vm181, 0.0
        %v228 = vld [vmem:[%s151] sm:$0xff]
        %v229 = vld [vmem:[%s151 + $0x8] sm:$0xff]
        %v230 = vld [vmem:[%s151 + $0x10] sm:$0xff]
        %v231 = vld [vmem:[%s151 + $0x18] sm:$0xff]
        %v232 = vld [vmem:[%s151 + $0x20] sm:$0xff]
        %v233 = vld [vmem:[%s151 + $0x28] sm:$0xff]
        %v234 = vld [vmem:[%s151 + $0x30] sm:$0xff]
        %v235 = vld [vmem:[%s151 + $0x38] sm:$0xff]
        %v236 = vld [vmem:[%s151 + $0x40] sm:$0xff]
        %v237 = vld [vmem:[%s151 + $0x48] sm:$0xff]
        %v238 = vld [vmem:[%s151 + $0x50] sm:$0xff]
        %v239 = vld [vmem:[%s151 + $0x58] sm:$0xff]
        %v240 = vld [vmem:[%s151 + $0x60] sm:$0xff]
        %v241 = vld [vmem:[%s151 + $0x68] sm:$0xff]
        %v242 = vld [vmem:[%s151 + $0x70] sm:$0xff]
        %v243 = vld [vmem:[%s151 + $0x78] sm:$0xff]
        %v244 = vld [vmem:[%s151 + $0x80] sm:$0xff]
        %v245 = vld [vmem:[%s151 + $0x88] sm:$0xff]
        %v246 = vld [vmem:[%s151 + $0x90] sm:$0xff]
        %v247 = vld [vmem:[%s151 + $0x98] sm:$0xff]
        %v248 = vld [vmem:[%s151 + $0xa0] sm:$0xff]
        %v249 = vld [vmem:[%s151 + $0xa8] sm:$0xff]
        %v250 = vld [vmem:[%s151 + $0xb0] sm:$0xff]
        %v251 = vld [vmem:[%s151 + $0xb8] sm:$0xff]
        %v252 = vld [vmem:[%s151 + $0xc0] sm:$0xff]
        %v253 = vld [vmem:[%s151 + $0xc8] sm:$0xff]
        %v254 = vld [vmem:[%s151 + $0xd0] sm:$0xff]
        %v255 = vld [vmem:[%s151 + $0xd8] sm:$0xff]
        %v256 = vld [vmem:[%s151 + $0xe0] sm:$0xff]
        %v257 = vld [vmem:[%s151 + $0xe8] sm:$0xff]
        %v258 = vld [vmem:[%s151 + $0xf0] sm:$0xff]
        %v259 = vld [vmem:[%s151 + $0xf8] sm:$0xff]
        %292 = vrot.lane.b32.xlu0 %v228, 1
        %v293 = vpop.permute.xlu0 %292
        %294 = vrot.lane.b32.xlu0 %v229, 1
        %v295 = vpop.permute.xlu0 %294
        %296 = vrot.lane.b32.xlu0 %v230, 1
        %v297 = vpop.permute.xlu0 %296
        %298 = vrot.lane.b32.xlu0 %v231, 1
        %v299 = vpop.permute.xlu0 %298
        %300 = vrot.lane.b32.xlu0 %v232, 1
        %v301 = vpop.permute.xlu0 %300
        %302 = vrot.lane.b32.xlu0 %v233, 1
        %v303 = vpop.permute.xlu0 %302
        %304 = vrot.lane.b32.xlu0 %v234, 1
        %v305 = vpop.permute.xlu0 %304
        %306 = vrot.lane.b32.xlu0 %v235, 1
        %v307 = vpop.permute.xlu0 %306
        %308 = vrot.lane.b32.xlu0 %v236, 1
        %v309 = vpop.permute.xlu0 %308
        %310 = vrot.lane.b32.xlu0 %v237, 1
        %v311 = vpop.permute.xlu0 %310
        %312 = vrot.lane.b32.xlu0 %v238, 1
        %v313 = vpop.permute.xlu0 %312
        %314 = vrot.lane.b32.xlu0 %v239, 1
        %v315 = vpop.permute.xlu0 %314
        %316 = vrot.lane.b32.xlu0 %v240, 1
        %v317 = vpop.permute.xlu0 %316
        %318 = vrot.lane.b32.xlu0 %v241, 1
        %v319 = vpop.permute.xlu0 %318
        %320 = vrot.lane.b32.xlu0 %v242, 1
        %v321 = vpop.permute.xlu0 %320
        %322 = vrot.lane.b32.xlu0 %v243, 1
        %v323 = vpop.permute.xlu0 %322
        %324 = vrot.lane.b32.xlu0 %v244, 1
        %v325 = vpop.permute.xlu0 %324
        %326 = vrot.lane.b32.xlu0 %v245, 1
        %v327 = vpop.permute.xlu0 %326
        %328 = vrot.lane.b32.xlu0 %v246, 1
        %v329 = vpop.permute.xlu0 %328
        %330 = vrot.lane.b32.xlu0 %v247, 1
        %v331 = vpop.permute.xlu0 %330
        %332 = vrot.lane.b32.xlu0 %v248, 1
        %v333 = vpop.permute.xlu0 %332
        %334 = vrot.lane.b32.xlu0 %v249, 1
        %v335 = vpop.permute.xlu0 %334
        %336 = vrot.lane.b32.xlu0 %v250, 1
        %v337 = vpop.permute.xlu0 %336
        %338 = vrot.lane.b32.xlu0 %v251, 1
        %v339 = vpop.permute.xlu0 %338
        %340 = vrot.lane.b32.xlu0 %v252, 1
        %v341 = vpop.permute.xlu0 %340
        %342 = vrot.lane.b32.xlu0 %v253, 1
        %v343 = vpop.permute.xlu0 %342
        %344 = vrot.lane.b32.xlu0 %v254, 1
        %v345 = vpop.permute.xlu0 %344
        %346 = vrot.lane.b32.xlu0 %v255, 1
        %v347 = vpop.permute.xlu0 %346
        %348 = vrot.lane.b32.xlu0 %v256, 1
        %v349 = vpop.permute.xlu0 %348
        %350 = vrot.lane.b32.xlu0 %v257, 1
        %v351 = vpop.permute.xlu0 %350
        %352 = vrot.lane.b32.xlu0 %v258, 1
        %v353 = vpop.permute.xlu0 %352
        %354 = vrot.lane.b32.xlu0 %v259, 1
        %v355 = vpop.permute.xlu0 %354
        %vm388 = vcmask 138248
        %389 = vst.msk [vmem:[#allocation2 + $0x1] sm:$0xff] %vm388, %v293
        %390 = vst.msk [vmem:[#allocation2 + $0x9] sm:$0xff] %vm388, %v295
        %391 = vst.msk [vmem:[#allocation2 + $0x19] sm:$0xff] %vm388, %v297
        %392 = vst.msk [vmem:[#allocation2 + $0x21] sm:$0xff] %vm388, %v299
        %393 = vst.msk [vmem:[#allocation2 + $0x31] sm:$0xff] %vm388, %v301
        %394 = vst.msk [vmem:[#allocation2 + $0x39] sm:$0xff] %vm388, %v303
        %395 = vst.msk [vmem:[#allocation2 + $0x49] sm:$0xff] %vm388, %v305
        %396 = vst.msk [vmem:[#allocation2 + $0x51] sm:$0xff] %vm388, %v307
        %397 = vst.msk [vmem:[#allocation2 + $0x61] sm:$0xff] %vm388, %v309
        %398 = vst.msk [vmem:[#allocation2 + $0x69] sm:$0xff] %vm388, %v311
        %399 = vst.msk [vmem:[#allocation2 + $0x79] sm:$0xff] %vm388, %v313
        %400 = vst.msk [vmem:[#allocation2 + $0x81] sm:$0xff] %vm388, %v315
        %401 = vst.msk [vmem:[#allocation2 + $0x91] sm:$0xff] %vm388, %v317
        %402 = vst.msk [vmem:[#allocation2 + $0x99] sm:$0xff] %vm388, %v319
        %403 = vst.msk [vmem:[#allocation2 + $0xa9] sm:$0xff] %vm388, %v321
        %404 = vst.msk [vmem:[#allocation2 + $0xb1] sm:$0xff] %vm388, %v323
        %405 = vst.msk [vmem:[#allocation2 + $0xc1] sm:$0xff] %vm388, %v325
        %406 = vst.msk [vmem:[#allocation2 + $0xc9] sm:$0xff] %vm388, %v327
        %407 = vst.msk [vmem:[#allocation2 + $0xd9] sm:$0xff] %vm388, %v329
        %408 = vst.msk [vmem:[#allocation2 + $0xe1] sm:$0xff] %vm388, %v331
        %409 = vst.msk [vmem:[#allocation2 + $0xf1] sm:$0xff] %vm388, %v333
        %410 = vst.msk [vmem:[#allocation2 + $0xf9] sm:$0xff] %vm388, %v335
        %411 = vst.msk [vmem:[#allocation2 + $0x109] sm:$0xff] %vm388, %v337
        %412 = vst.msk [vmem:[#allocation2 + $0x111] sm:$0xff] %vm388, %v339
        %413 = vst.msk [vmem:[#allocation2 + $0x121] sm:$0xff] %vm388, %v341
        %414 = vst.msk [vmem:[#allocation2 + $0x129] sm:$0xff] %vm388, %v343
        %415 = vst.msk [vmem:[#allocation2 + $0x139] sm:$0xff] %vm388, %v345
        %416 = vst.msk [vmem:[#allocation2 + $0x141] sm:$0xff] %vm388, %v347
        %417 = vst.msk [vmem:[#allocation2 + $0x151] sm:$0xff] %vm388, %v349
        %418 = vst.msk [vmem:[#allocation2 + $0x159] sm:$0xff] %vm388, %v351
        %419 = vst.msk [vmem:[#allocation2 + $0x169] sm:$0xff] %vm388, %v353
        %420 = vst.msk [vmem:[#allocation2 + $0x171] sm:$0xff] %vm388, %v355
        %s421 = sld [smem:[#allocation3]]
        %s422 = scalar_lea.vmem [#allocation2], 72
        %v423 = vld [vmem:[%s422] sm:$0xff]
        %v424 = vld [vmem:[%s422 + $0x8] sm:$0xff]
        %v425 = vstv %s421
        %v426 = vmul.f32 %v423, %v425
        %v427 = vmul.f32 %v424, %v425
        %v428 = vadd.f32 %v426, 0.0
        %v429 = vadd.f32 %v427, 0.0
        %s430 = sld [smem:[#allocation3 + $0x9]]
        %s431 = scalar_lea.vmem [#allocation2], 168
        %v432 = vld [vmem:[%s431] sm:$0xff]
        %v433 = vld [vmem:[%s431 + $0x8] sm:$0xff]
        %v434 = vstv %s430
        %v435 = vmul.f32 %v432, %v434
        %v436 = vmul.f32 %v433, %v434
        %v437 = vadd.f32 %v428, %v435
        %v438 = vadd.f32 %v429, %v436
        %s439 = sld [smem:[#allocation3 + $0x12]]
        %s440 = scalar_lea.vmem [#allocation2], 264
        %v441 = vld [vmem:[%s440] sm:$0xff]
        %v442 = vld [vmem:[%s440 + $0x8] sm:$0xff]
        %v443 = vstv %s439
        %v444 = vmul.f32 %v441, %v443
        %v445 = vmul.f32 %v442, %v443
        %v446 = vadd.f32 %v437, %v444
        %v447 = vadd.f32 %v438, %v445
        %s448 = sld [smem:[#allocation3 + $0x1b]]
        %s449 = scalar_lea.vmem [#allocation2], 360
        %v450 = vld [vmem:[%s449] sm:$0xff]
        %v451 = vld [vmem:[%s449 + $0x8] sm:$0xff]
        %v452 = vstv %s448
        %v453 = vmul.f32 %v450, %v452
        %v454 = vmul.f32 %v451, %v452
        %v455 = vadd.f32 %v446, %v453
        %v456 = vadd.f32 %v447, %v454
        %s457 = sld [smem:[#allocation3 + $0x1]]
        %s458 = scalar_lea.vmem [#allocation2], 48
        %v459 = vld [vmem:[%s458] sm:$0xff]
        %v460 = vld [vmem:[%s458 + $0x8] sm:$0xff]
        %v461 = vstv %s457
        %v462 = vmul.f32 %v459, %v461
        %v463 = vmul.f32 %v460, %v461
        %466 = vrot.lane.b32.xlu0 %v462, 127
        %v467 = vpop.permute.xlu0 %466
        %468 = vrot.lane.b32.xlu0 %v463, 127
        %v469 = vpop.permute.xlu0 %468
        %v472 = vadd.f32 %v455, %v467
        %v473 = vadd.f32 %v456, %v469
        %s474 = sld [smem:[#allocation3 + $0xa]]
        %s475 = scalar_lea.vmem [#allocation2], 144
        %v476 = vld [vmem:[%s475] sm:$0xff]
        %v477 = vld [vmem:[%s475 + $0x8] sm:$0xff]
        %v478 = vstv %s474
        %v479 = vmul.f32 %v476, %v478
        %v480 = vmul.f32 %v477, %v478
        %483 = vrot.lane.b32.xlu0 %v479, 127
        %v484 = vpop.permute.xlu0 %483
        %485 = vrot.lane.b32.xlu0 %v480, 127
        %v486 = vpop.permute.xlu0 %485
        %v489 = vadd.f32 %v472, %v484
        %v490 = vadd.f32 %v473, %v486
        %s491 = sld [smem:[#allocation3 + $0x13]]
        %s492 = scalar_lea.vmem [#allocation2], 240
        %v493 = vld [vmem:[%s492] sm:$0xff]
        %v494 = vld [vmem:[%s492 + $0x8] sm:$0xff]
        %v495 = vstv %s491
        %v496 = vmul.f32 %v493, %v495
        %v497 = vmul.f32 %v494, %v495
        %500 = vrot.lane.b32.xlu0 %v496, 127
        %v501 = vpop.permute.xlu0 %500
        %502 = vrot.lane.b32.xlu0 %v497, 127
        %v503 = vpop.permute.xlu0 %502
        %v506 = vadd.f32 %v489, %v501
        %v507 = vadd.f32 %v490, %v503
        %s508 = sld [smem:[#allocation3 + $0x1c]]
        %s509 = scalar_lea.vmem [#allocation2], 336
        %v510 = vld [vmem:[%s509] sm:$0xff]
        %v511 = vld [vmem:[%s509 + $0x8] sm:$0xff]
        %v512 = vstv %s508
        %v513 = vmul.f32 %v510, %v512
        %v514 = vmul.f32 %v511, %v512
        %517 = vrot.lane.b32.xlu0 %v513, 127
        %v518 = vpop.permute.xlu0 %517
        %519 = vrot.lane.b32.xlu0 %v514, 127
        %v520 = vpop.permute.xlu0 %519
        %v523 = vadd.f32 %v506, %v518
        %v524 = vadd.f32 %v507, %v520
        %s525 = sld [smem:[#allocation3 + $0x2]]
        %v526 = vstv %s525
        %v527 = vmul.f32 %v423, %v526
        %v528 = vmul.f32 %v424, %v526
        %531 = vrot.lane.b32.xlu0 %v527, 127
        %v532 = vpop.permute.xlu0 %531
        %533 = vrot.lane.b32.xlu0 %v528, 127
        %v534 = vpop.permute.xlu0 %533
        %v537 = vadd.f32 %v523, %v532
        %v538 = vadd.f32 %v524, %v534
        %s539 = sld [smem:[#allocation3 + $0xb]]
        %v540 = vstv %s539
        %v541 = vmul.f32 %v432, %v540
        %v542 = vmul.f32 %v433, %v540
        %545 = vrot.lane.b32.xlu0 %v541, 127
        %v546 = vpop.permute.xlu0 %545
        %547 = vrot.lane.b32.xlu0 %v542, 127
        %v548 = vpop.permute.xlu0 %547
        %v551 = vadd.f32 %v537, %v546
        %v552 = vadd.f32 %v538, %v548
        %s553 = sld [smem:[#allocation3 + $0x14]]
        %v554 = vstv %s553
        %v555 = vmul.f32 %v441, %v554
        %v556 = vmul.f32 %v442, %v554
        %559 = vrot.lane.b32.xlu0 %v555, 127
        %v560 = vpop.permute.xlu0 %559
        %561 = vrot.lane.b32.xlu0 %v556, 127
        %v562 = vpop.permute.xlu0 %561
        %v565 = vadd.f32 %v551, %v560
        %v566 = vadd.f32 %v552, %v562
        %s567 = sld [smem:[#allocation3 + $0x1d]]
        %v568 = vstv %s567
        %v569 = vmul.f32 %v450, %v568
        %v570 = vmul.f32 %v451, %v568
        %573 = vrot.lane.b32.xlu0 %v569, 127
        %v574 = vpop.permute.xlu0 %573
        %575 = vrot.lane.b32.xlu0 %v570, 127
        %v576 = vpop.permute.xlu0 %575
        %v579 = vadd.f32 %v565, %v574
        %v580 = vadd.f32 %v566, %v576
        %s581 = sld [smem:[#allocation3 + $0x3]]
        %s582 = scalar_lea.vmem [#allocation2], 24
        %v583 = vld [vmem:[%s582 + $0x1] sm:$0xff]
        %v584 = vld [vmem:[%s582 + $0x9] sm:$0xff]
        %v585 = vstv %s581
        %v586 = vmul.f32 %v583, %v585
        %v587 = vmul.f32 %v584, %v585
        %v588 = vadd.f32 %v579, %v586
        %v589 = vadd.f32 %v580, %v587
        %s590 = sld [smem:[#allocation3 + $0xc]]
        %s591 = scalar_lea.vmem [#allocation2], 120
        %v592 = vld [vmem:[%s591 + $0x1] sm:$0xff]
        %v593 = vld [vmem:[%s591 + $0x9] sm:$0xff]
        %v594 = vstv %s590
        %v595 = vmul.f32 %v592, %v594
        %v596 = vmul.f32 %v593, %v594
        %v597 = vadd.f32 %v588, %v595
        %v598 = vadd.f32 %v589, %v596
        %s599 = sld [smem:[#allocation3 + $0x15]]
        %s600 = scalar_lea.vmem [#allocation2], 216
        %v601 = vld [vmem:[%s600 + $0x1] sm:$0xff]
        %v602 = vld [vmem:[%s600 + $0x9] sm:$0xff]
        %v603 = vstv %s599
        %v604 = vmul.f32 %v601, %v603
        %v605 = vmul.f32 %v602, %v603
        %v606 = vadd.f32 %v597, %v604
        %v607 = vadd.f32 %v598, %v605
        %s608 = sld [smem:[#allocation3 + $0x1e]]
        %s609 = scalar_lea.vmem [#allocation2], 312
        %v610 = vld [vmem:[%s609 + $0x1] sm:$0xff]
        %v611 = vld [vmem:[%s609 + $0x9] sm:$0xff]
        %v612 = vstv %s608
        %v613 = vmul.f32 %v610, %v612
        %v614 = vmul.f32 %v611, %v612
        %v615 = vadd.f32 %v606, %v613
        %v616 = vadd.f32 %v607, %v614
        %s617 = sld [smem:[#allocation3 + $0x4]]
        %v618 = vld [vmem:[#allocation2 + $0x1] sm:$0xff]
        %v619 = vld [vmem:[#allocation2 + $0x9] sm:$0xff]
        %v620 = vstv %s617
        %v621 = vmul.f32 %v618, %v620
        %v622 = vmul.f32 %v619, %v620
        %625 = vrot.lane.b32.xlu0 %v621, 127
        %v626 = vpop.permute.xlu0 %625
        %627 = vrot.lane.b32.xlu0 %v622, 127
        %v628 = vpop.permute.xlu0 %627
        %v631 = vadd.f32 %v615, %v626
        %v632 = vadd.f32 %v616, %v628
        %s633 = sld [smem:[#allocation3 + $0xd]]
        %s634 = scalar_lea.vmem [#allocation2], 96
        %v635 = vld [vmem:[%s634 + $0x1] sm:$0xff]
        %v636 = vld [vmem:[%s634 + $0x9] sm:$0xff]
        %v637 = vstv %s633
        %v638 = vmul.f32 %v635, %v637
        %v639 = vmul.f32 %v636, %v637
        %642 = vrot.lane.b32.xlu0 %v638, 127
        %v643 = vpop.permute.xlu0 %642
        %644 = vrot.lane.b32.xlu0 %v639, 127
        %v645 = vpop.permute.xlu0 %644
        %v648 = vadd.f32 %v631, %v643
        %v649 = vadd.f32 %v632, %v645
        %s650 = sld [smem:[#allocation3 + $0x16]]
        %s651 = scalar_lea.vmem [#allocation2], 192
        %v652 = vld [vmem:[%s651 + $0x1] sm:$0xff]
        %v653 = vld [vmem:[%s651 + $0x9] sm:$0xff]
        %v654 = vstv %s650
        %v655 = vmul.f32 %v652, %v654
        %v656 = vmul.f32 %v653, %v654
        %659 = vrot.lane.b32.xlu0 %v655, 127
        %v660 = vpop.permute.xlu0 %659
        %661 = vrot.lane.b32.xlu0 %v656, 127
        %v662 = vpop.permute.xlu0 %661
        %v665 = vadd.f32 %v648, %v660
        %v666 = vadd.f32 %v649, %v662
        %s667 = sld [smem:[#allocation3 + $0x1f]]
        %s668 = scalar_lea.vmem [#allocation2], 288
        %v669 = vld [vmem:[%s668 + $0x1] sm:$0xff]
        %v670 = vld [vmem:[%s668 + $0x9] sm:$0xff]
        %v671 = vstv %s667
        %v672 = vmul.f32 %v669, %v671
        %v673 = vmul.f32 %v670, %v671
        %676 = vrot.lane.b32.xlu0 %v672, 127
        %v677 = vpop.permute.xlu0 %676
        %678 = vrot.lane.b32.xlu0 %v673, 127
        %v679 = vpop.permute.xlu0 %678
        %v682 = vadd.f32 %v665, %v677
        %v683 = vadd.f32 %v666, %v679
        %s684 = sld [smem:[#allocation3 + $0x5]]
        %v685 = vstv %s684
        %v686 = vmul.f32 %v583, %v685
        %v687 = vmul.f32 %v584, %v685
        %690 = vrot.lane.b32.xlu0 %v686, 127
        %v691 = vpop.permute.xlu0 %690
        %692 = vrot.lane.b32.xlu0 %v687, 127
        %v693 = vpop.permute.xlu0 %692
        %v696 = vadd.f32 %v682, %v691
        %v697 = vadd.f32 %v683, %v693
        %s698 = sld [smem:[#allocation3 + $0xe]]
        %v699 = vstv %s698
        %v700 = vmul.f32 %v592, %v699
        %v701 = vmul.f32 %v593, %v699
        %704 = vrot.lane.b32.xlu0 %v700, 127
        %v705 = vpop.permute.xlu0 %704
        %706 = vrot.lane.b32.xlu0 %v701, 127
        %v707 = vpop.permute.xlu0 %706
        %v710 = vadd.f32 %v696, %v705
        %v711 = vadd.f32 %v697, %v707
        %s712 = sld [smem:[#allocation3 + $0x17]]
        %v713 = vstv %s712
        %v714 = vmul.f32 %v601, %v713
        %v715 = vmul.f32 %v602, %v713
        %718 = vrot.lane.b32.xlu0 %v714, 127
        %v719 = vpop.permute.xlu0 %718
        %720 = vrot.lane.b32.xlu0 %v715, 127
        %v721 = vpop.permute.xlu0 %720
        %v724 = vadd.f32 %v710, %v719
        %v725 = vadd.f32 %v711, %v721
        %s726 = sld [smem:[#allocation3 + $0x20]]
        %v727 = vstv %s726
        %v728 = vmul.f32 %v610, %v727
        %v729 = vmul.f32 %v611, %v727
        %732 = vrot.lane.b32.xlu0 %v728, 127
        %v733 = vpop.permute.xlu0 %732
        %734 = vrot.lane.b32.xlu0 %v729, 127
        %v735 = vpop.permute.xlu0 %734
        %v738 = vadd.f32 %v724, %v733
        %v739 = vadd.f32 %v725, %v735
        %s740 = sld [smem:[#allocation3 + $0x6]]
        %v741 = vld [vmem:[%s422 + $0x1] sm:$0xff]
        %v742 = vld [vmem:[%s422 + $0x9] sm:$0xff]
        %v743 = vstv %s740
        %v744 = vmul.f32 %v741, %v743
        %v745 = vmul.f32 %v742, %v743
        %v746 = vadd.f32 %v738, %v744
        %v747 = vadd.f32 %v739, %v745
        %s748 = sld [smem:[#allocation3 + $0xf]]
        %v749 = vld [vmem:[%s431 + $0x1] sm:$0xff]
        %v750 = vld [vmem:[%s431 + $0x9] sm:$0xff]
        %v751 = vstv %s748
        %v752 = vmul.f32 %v749, %v751
        %v753 = vmul.f32 %v750, %v751
        %v754 = vadd.f32 %v746, %v752
        %v755 = vadd.f32 %v747, %v753
        %s756 = sld [smem:[#allocation3 + $0x18]]
        %v757 = vld [vmem:[%s440 + $0x1] sm:$0xff]
        %v758 = vld [vmem:[%s440 + $0x9] sm:$0xff]
        %v759 = vstv %s756
        %v760 = vmul.f32 %v757, %v759
        %v761 = vmul.f32 %v758, %v759
        %v762 = vadd.f32 %v754, %v760
        %v763 = vadd.f32 %v755, %v761
        %s764 = sld [smem:[#allocation3 + $0x21]]
        %v765 = vld [vmem:[%s449 + $0x1] sm:$0xff]
        %v766 = vld [vmem:[%s449 + $0x9] sm:$0xff]
        %v767 = vstv %s764
        %v768 = vmul.f32 %v765, %v767
        %v769 = vmul.f32 %v766, %v767
        %v770 = vadd.f32 %v762, %v768
        %v771 = vadd.f32 %v763, %v769
        %s772 = sld [smem:[#allocation3 + $0x7]]
        %v773 = vld [vmem:[%s458 + $0x1] sm:$0xff]
        %v774 = vld [vmem:[%s458 + $0x9] sm:$0xff]
        %v775 = vstv %s772
        %v776 = vmul.f32 %v773, %v775
        %v777 = vmul.f32 %v774, %v775
        %780 = vrot.lane.b32.xlu0 %v776, 127
        %v781 = vpop.permute.xlu0 %780
        %782 = vrot.lane.b32.xlu0 %v777, 127
        %v783 = vpop.permute.xlu0 %782
        %v786 = vadd.f32 %v770, %v781
        %v787 = vadd.f32 %v771, %v783
        %s788 = sld [smem:[#allocation3 + $0x10]]
        %v789 = vld [vmem:[%s475 + $0x1] sm:$0xff]
        %v790 = vld [vmem:[%s475 + $0x9] sm:$0xff]
        %v791 = vstv %s788
        %v792 = vmul.f32 %v789, %v791
        %v793 = vmul.f32 %v790, %v791
        %796 = vrot.lane.b32.xlu0 %v792, 127
        %v797 = vpop.permute.xlu0 %796
        %798 = vrot.lane.b32.xlu0 %v793, 127
        %v799 = vpop.permute.xlu0 %798
        %v802 = vadd.f32 %v786, %v797
        %v803 = vadd.f32 %v787, %v799
        %s804 = sld [smem:[#allocation3 + $0x19]]
        %v805 = vld [vmem:[%s492 + $0x1] sm:$0xff]
        %v806 = vld [vmem:[%s492 + $0x9] sm:$0xff]
        %v807 = vstv %s804
        %v808 = vmul.f32 %v805, %v807
        %v809 = vmul.f32 %v806, %v807
        %812 = vrot.lane.b32.xlu0 %v808, 127
        %v813 = vpop.permute.xlu0 %812
        %814 = vrot.lane.b32.xlu0 %v809, 127
        %v815 = vpop.permute.xlu0 %814
        %v818 = vadd.f32 %v802, %v813
        %v819 = vadd.f32 %v803, %v815
        %s820 = sld [smem:[#allocation3 + $0x22]]
        %v821 = vld [vmem:[%s509 + $0x1] sm:$0xff]
        %v822 = vld [vmem:[%s509 + $0x9] sm:$0xff]
        %v823 = vstv %s820
        %v824 = vmul.f32 %v821, %v823
        %v825 = vmul.f32 %v822, %v823
        %828 = vrot.lane.b32.xlu0 %v824, 127
        %v829 = vpop.permute.xlu0 %828
        %830 = vrot.lane.b32.xlu0 %v825, 127
        %v831 = vpop.permute.xlu0 %830
        %v834 = vadd.f32 %v818, %v829
        %v835 = vadd.f32 %v819, %v831
        %s836 = sld [smem:[#allocation3 + $0x8]]
        %v837 = vstv %s836
        %v838 = vmul.f32 %v741, %v837
        %v839 = vmul.f32 %v742, %v837
        %842 = vrot.lane.b32.xlu0 %v838, 127
        %v843 = vpop.permute.xlu0 %842
        %844 = vrot.lane.b32.xlu0 %v839, 127
        %v845 = vpop.permute.xlu0 %844
        %v848 = vadd.f32 %v834, %v843
        %v849 = vadd.f32 %v835, %v845
        %s850 = sld [smem:[#allocation3 + $0x11]]
        %v851 = vstv %s850
        %v852 = vmul.f32 %v749, %v851
        %v853 = vmul.f32 %v750, %v851
        %856 = vrot.lane.b32.xlu0 %v852, 127
        %v857 = vpop.permute.xlu0 %856
        %858 = vrot.lane.b32.xlu0 %v853, 127
        %v859 = vpop.permute.xlu0 %858
        %v862 = vadd.f32 %v848, %v857
        %v863 = vadd.f32 %v849, %v859
        %s864 = sld [smem:[#allocation3 + $0x1a]]
        %v865 = vstv %s864
        %v866 = vmul.f32 %v757, %v865
        %v867 = vmul.f32 %v758, %v865
        %870 = vrot.lane.b32.xlu0 %v866, 127
        %v871 = vpop.permute.xlu0 %870
        %872 = vrot.lane.b32.xlu0 %v867, 127
        %v873 = vpop.permute.xlu0 %872
        %v876 = vadd.f32 %v862, %v871
        %v877 = vadd.f32 %v863, %v873
        %s878 = sld [smem:[#allocation3 + $0x23]]
        %v879 = vstv %s878
        %v880 = vmul.f32 %v765, %v879
        %v881 = vmul.f32 %v766, %v879
        %884 = vrot.lane.b32.xlu0 %v880, 127
        %v885 = vpop.permute.xlu0 %884
        %886 = vrot.lane.b32.xlu0 %v881, 127
        %v887 = vpop.permute.xlu0 %886
        %v890 = vadd.f32 %v876, %v885
        %v891 = vadd.f32 %v877, %v887
        %vm892 = vcmask 130048
        %893 = vst.msk [vmem:[%s177] sm:$0xff] %vm892, %v890
        %894 = vst.msk [vmem:[%s177 + $0x8] sm:$0xff] %vm892, %v891
        %s895 = sld [smem:[#allocation3]]
        %v896 = vstv %s895
        %v897 = vmul.f32 %v459, %v896
        %v898 = vmul.f32 %v460, %v896
        %v899 = vadd.f32 %v897, 0.0
        %v900 = vadd.f32 %v898, 0.0
        %s901 = sld [smem:[#allocation3 + $0x9]]
        %v902 = vstv %s901
        %v903 = vmul.f32 %v476, %v902
        %v904 = vmul.f32 %v477, %v902
        %v905 = vadd.f32 %v899, %v903
        %v906 = vadd.f32 %v900, %v904
        %s907 = sld [smem:[#allocation3 + $0x12]]
        %v908 = vstv %s907
        %v909 = vmul.f32 %v493, %v908
        %v910 = vmul.f32 %v494, %v908
        %v911 = vadd.f32 %v905, %v909
        %v912 = vadd.f32 %v906, %v910
        %s913 = sld [smem:[#allocation3 + $0x1b]]
        %v914 = vstv %s913
        %v915 = vmul.f32 %v510, %v914
        %v916 = vmul.f32 %v511, %v914
        %v917 = vadd.f32 %v911, %v915
        %v918 = vadd.f32 %v912, %v916
        %s919 = sld [smem:[#allocation3 + $0x1]]
        %v920 = vstv %s919
        %v921 = vmul.f32 %v423, %v920
        %v922 = vmul.f32 %v424, %v920
        %v923 = vadd.f32 %v917, %v921
        %v924 = vadd.f32 %v918, %v922
        %s925 = sld [smem:[#allocation3 + $0xa]]
        %v926 = vstv %s925
        %v927 = vmul.f32 %v432, %v926
        %v928 = vmul.f32 %v433, %v926
        %v929 = vadd.f32 %v923, %v927
        %v930 = vadd.f32 %v924, %v928
        %s931 = sld [smem:[#allocation3 + $0x13]]
        %v932 = vstv %s931
        %v933 = vmul.f32 %v441, %v932
        %v934 = vmul.f32 %v442, %v932
        %v935 = vadd.f32 %v929, %v933
        %v936 = vadd.f32 %v930, %v934
        %s937 = sld [smem:[#allocation3 + $0x1c]]
        %v938 = vstv %s937
        %v939 = vmul.f32 %v450, %v938
        %v940 = vmul.f32 %v451, %v938
        %v941 = vadd.f32 %v935, %v939
        %v942 = vadd.f32 %v936, %v940
        %s943 = sld [smem:[#allocation3 + $0x2]]
        %v944 = vld [vmem:[%s458] sm:$0xff]
        %v945 = vld [vmem:[%s458 + $0x8] sm:$0xff]
        %v946 = vstv %s943
        %v947 = vmul.f32 %v944, %v946
        %v948 = vmul.f32 %v945, %v946
        %951 = vrot.lane.b32.xlu0 %v947, 127
        %v952 = vpop.permute.xlu0 %951
        %953 = vrot.lane.b32.xlu0 %v948, 127
        %v954 = vpop.permute.xlu0 %953
        %v957 = vadd.f32 %v941, %v952
        %v958 = vadd.f32 %v942, %v954
        %s959 = sld [smem:[#allocation3 + $0xb]]
        %v960 = vld [vmem:[%s475] sm:$0xff]
        %v961 = vld [vmem:[%s475 + $0x8] sm:$0xff]
        %v962 = vstv %s959
        %v963 = vmul.f32 %v960, %v962
        %v964 = vmul.f32 %v961, %v962
        %967 = vrot.lane.b32.xlu0 %v963, 127
        %v968 = vpop.permute.xlu0 %967
        %969 = vrot.lane.b32.xlu0 %v964, 127
        %v970 = vpop.permute.xlu0 %969
        %v973 = vadd.f32 %v957, %v968
        %v974 = vadd.f32 %v958, %v970
        %s975 = sld [smem:[#allocation3 + $0x14]]
        %v976 = vld [vmem:[%s492] sm:$0xff]
        %v977 = vld [vmem:[%s492 + $0x8] sm:$0xff]
        %v978 = vstv %s975
        %v979 = vmul.f32 %v976, %v978
        %v980 = vmul.f32 %v977, %v978
        %983 = vrot.lane.b32.xlu0 %v979, 127
        %v984 = vpop.permute.xlu0 %983
        %985 = vrot.lane.b32.xlu0 %v980, 127
        %v986 = vpop.permute.xlu0 %985
        %v989 = vadd.f32 %v973, %v984
        %v990 = vadd.f32 %v974, %v986
        %s991 = sld [smem:[#allocation3 + $0x1d]]
        %v992 = vld [vmem:[%s509] sm:$0xff]
        %v993 = vld [vmem:[%s509 + $0x8] sm:$0xff]
        %v994 = vstv %s991
        %v995 = vmul.f32 %v992, %v994
        %v996 = vmul.f32 %v993, %v994
        %999 = vrot.lane.b32.xlu0 %v995, 127
        %v1000 = vpop.permute.xlu0 %999
        %1001 = vrot.lane.b32.xlu0 %v996, 127
        %v1002 = vpop.permute.xlu0 %1001
        %v1005 = vadd.f32 %v989, %v1000
        %v1006 = vadd.f32 %v990, %v1002
        %s1007 = sld [smem:[#allocation3 + $0x3]]
        %v1008 = vstv %s1007
        %v1009 = vmul.f32 %v618, %v1008
        %v1010 = vmul.f32 %v619, %v1008
        %v1011 = vadd.f32 %v1005, %v1009
        %v1012 = vadd.f32 %v1006, %v1010
        %s1013 = sld [smem:[#allocation3 + $0xc]]
        %v1014 = vstv %s1013
        %v1015 = vmul.f32 %v635, %v1014
        %v1016 = vmul.f32 %v636, %v1014
        %v1017 = vadd.f32 %v1011, %v1015
        %v1018 = vadd.f32 %v1012, %v1016
        %s1019 = sld [smem:[#allocation3 + $0x15]]
        %v1020 = vstv %s1019
        %v1021 = vmul.f32 %v652, %v1020
        %v1022 = vmul.f32 %v653, %v1020
        %v1023 = vadd.f32 %v1017, %v1021
        %v1024 = vadd.f32 %v1018, %v1022
        %s1025 = sld [smem:[#allocation3 + $0x1e]]
        %v1026 = vstv %s1025
        %v1027 = vmul.f32 %v669, %v1026
        %v1028 = vmul.f32 %v670, %v1026
        %v1029 = vadd.f32 %v1023, %v1027
        %v1030 = vadd.f32 %v1024, %v1028
        %s1031 = sld [smem:[#allocation3 + $0x4]]
        %v1032 = vstv %s1031
        %v1033 = vmul.f32 %v583, %v1032
        %v1034 = vmul.f32 %v584, %v1032
        %v1035 = vadd.f32 %v1029, %v1033
        %v1036 = vadd.f32 %v1030, %v1034
        %s1037 = sld [smem:[#allocation3 + $0xd]]
        %v1038 = vstv %s1037
        %v1039 = vmul.f32 %v592, %v1038
        %v1040 = vmul.f32 %v593, %v1038
        %v1041 = vadd.f32 %v1035, %v1039
        %v1042 = vadd.f32 %v1036, %v1040
        %s1043 = sld [smem:[#allocation3 + $0x16]]
        %v1044 = vstv %s1043
        %v1045 = vmul.f32 %v601, %v1044
        %v1046 = vmul.f32 %v602, %v1044
        %v1047 = vadd.f32 %v1041, %v1045
        %v1048 = vadd.f32 %v1042, %v1046
        %s1049 = sld [smem:[#allocation3 + $0x1f]]
        %v1050 = vstv %s1049
        %v1051 = vmul.f32 %v610, %v1050
        %v1052 = vmul.f32 %v611, %v1050
        %v1053 = vadd.f32 %v1047, %v1051
        %v1054 = vadd.f32 %v1048, %v1052
        %s1055 = sld [smem:[#allocation3 + $0x5]]
        %v1056 = vld [vmem:[#allocation2 + $0x1] sm:$0xff]
        %v1057 = vld [vmem:[#allocation2 + $0x9] sm:$0xff]
        %v1058 = vstv %s1055
        %v1059 = vmul.f32 %v1056, %v1058
        %v1060 = vmul.f32 %v1057, %v1058
        %1063 = vrot.lane.b32.xlu0 %v1059, 127
        %v1064 = vpop.permute.xlu0 %1063
        %1065 = vrot.lane.b32.xlu0 %v1060, 127
        %v1066 = vpop.permute.xlu0 %1065
        %v1069 = vadd.f32 %v1053, %v1064
        %v1070 = vadd.f32 %v1054, %v1066
        %s1071 = sld [smem:[#allocation3 + $0xe]]
        %v1072 = vld [vmem:[%s634 + $0x1] sm:$0xff]
        %v1073 = vld [vmem:[%s634 + $0x9] sm:$0xff]
        %v1074 = vstv %s1071
        %v1075 = vmul.f32 %v1072, %v1074
        %v1076 = vmul.f32 %v1073, %v1074
        %1079 = vrot.lane.b32.xlu0 %v1075, 127
        %v1080 = vpop.permute.xlu0 %1079
        %1081 = vrot.lane.b32.xlu0 %v1076, 127
        %v1082 = vpop.permute.xlu0 %1081
        %v1085 = vadd.f32 %v1069, %v1080
        %v1086 = vadd.f32 %v1070, %v1082
        %s1087 = sld [smem:[#allocation3 + $0x17]]
        %v1088 = vld [vmem:[%s651 + $0x1] sm:$0xff]
        %v1089 = vld [vmem:[%s651 + $0x9] sm:$0xff]
        %v1090 = vstv %s1087
        %v1091 = vmul.f32 %v1088, %v1090
        %v1092 = vmul.f32 %v1089, %v1090
        %1095 = vrot.lane.b32.xlu0 %v1091, 127
        %v1096 = vpop.permute.xlu0 %1095
        %1097 = vrot.lane.b32.xlu0 %v1092, 127
        %v1098 = vpop.permute.xlu0 %1097
        %v1101 = vadd.f32 %v1085, %v1096
        %v1102 = vadd.f32 %v1086, %v1098
        %s1103 = sld [smem:[#allocation3 + $0x20]]
        %v1104 = vld [vmem:[%s668 + $0x1] sm:$0xff]
        %v1105 = vld [vmem:[%s668 + $0x9] sm:$0xff]
        %v1106 = vstv %s1103
        %v1107 = vmul.f32 %v1104, %v1106
        %v1108 = vmul.f32 %v1105, %v1106
        %1111 = vrot.lane.b32.xlu0 %v1107, 127
        %v1112 = vpop.permute.xlu0 %1111
        %1113 = vrot.lane.b32.xlu0 %v1108, 127
        %v1114 = vpop.permute.xlu0 %1113
        %v1117 = vadd.f32 %v1101, %v1112
        %v1118 = vadd.f32 %v1102, %v1114
        %s1119 = sld [smem:[#allocation3 + $0x6]]
        %v1120 = vstv %s1119
        %v1121 = vmul.f32 %v773, %v1120
        %v1122 = vmul.f32 %v774, %v1120
        %v1123 = vadd.f32 %v1117, %v1121
        %v1124 = vadd.f32 %v1118, %v1122
        %s1125 = sld [smem:[#allocation3 + $0xf]]
        %v1126 = vstv %s1125
        %v1127 = vmul.f32 %v789, %v1126
        %v1128 = vmul.f32 %v790, %v1126
        %v1129 = vadd.f32 %v1123, %v1127
        %v1130 = vadd.f32 %v1124, %v1128
        %s1131 = sld [smem:[#allocation3 + $0x18]]
        %v1132 = vstv %s1131
        %v1133 = vmul.f32 %v805, %v1132
        %v1134 = vmul.f32 %v806, %v1132
        %v1135 = vadd.f32 %v1129, %v1133
        %v1136 = vadd.f32 %v1130, %v1134
        %s1137 = sld [smem:[#allocation3 + $0x21]]
        %v1138 = vstv %s1137
        %v1139 = vmul.f32 %v821, %v1138
        %v1140 = vmul.f32 %v822, %v1138
        %v1141 = vadd.f32 %v1135, %v1139
        %v1142 = vadd.f32 %v1136, %v1140
        %s1143 = sld [smem:[#allocation3 + $0x7]]
        %v1144 = vstv %s1143
        %v1145 = vmul.f32 %v741, %v1144
        %v1146 = vmul.f32 %v742, %v1144
        %v1147 = vadd.f32 %v1141, %v1145
        %v1148 = vadd.f32 %v1142, %v1146
        %s1149 = sld [smem:[#allocation3 + $0x10]]
        %v1150 = vstv %s1149
        %v1151 = vmul.f32 %v749, %v1150
        %v1152 = vmul.f32 %v750, %v1150
        %v1153 = vadd.f32 %v1147, %v1151
        %v1154 = vadd.f32 %v1148, %v1152
        %s1155 = sld [smem:[#allocation3 + $0x19]]
        %v1156 = vstv %s1155
        %v1157 = vmul.f32 %v757, %v1156
        %v1158 = vmul.f32 %v758, %v1156
        %v1159 = vadd.f32 %v1153, %v1157
        %v1160 = vadd.f32 %v1154, %v1158
        %s1161 = sld [smem:[#allocation3 + $0x22]]
        %v1162 = vstv %s1161
        %v1163 = vmul.f32 %v765, %v1162
        %v1164 = vmul.f32 %v766, %v1162
        %v1165 = vadd.f32 %v1159, %v1163
        %v1166 = vadd.f32 %v1160, %v1164
        %s1167 = sld [smem:[#allocation3 + $0x8]]
        %v1168 = vld [vmem:[%s458 + $0x1] sm:$0xff]
        %v1169 = vld [vmem:[%s458 + $0x9] sm:$0xff]
        %v1170 = vstv %s1167
        %v1171 = vmul.f32 %v1168, %v1170
        %v1172 = vmul.f32 %v1169, %v1170
        %1175 = vrot.lane.b32.xlu0 %v1171, 127
        %v1176 = vpop.permute.xlu0 %1175
        %1177 = vrot.lane.b32.xlu0 %v1172, 127
        %v1178 = vpop.permute.xlu0 %1177
        %v1181 = vadd.f32 %v1165, %v1176
        %v1182 = vadd.f32 %v1166, %v1178
        %s1183 = sld [smem:[#allocation3 + $0x11]]
        %v1184 = vld [vmem:[%s475 + $0x1] sm:$0xff]
        %v1185 = vld [vmem:[%s475 + $0x9] sm:$0xff]
        %v1186 = vstv %s1183
        %v1187 = vmul.f32 %v1184, %v1186
        %v1188 = vmul.f32 %v1185, %v1186
        %1191 = vrot.lane.b32.xlu0 %v1187, 127
        %v1192 = vpop.permute.xlu0 %1191
        %1193 = vrot.lane.b32.xlu0 %v1188, 127
        %v1194 = vpop.permute.xlu0 %1193
        %v1197 = vadd.f32 %v1181, %v1192
        %v1198 = vadd.f32 %v1182, %v1194
        %s1199 = sld [smem:[#allocation3 + $0x1a]]
        %v1200 = vld [vmem:[%s492 + $0x1] sm:$0xff]
        %v1201 = vld [vmem:[%s492 + $0x9] sm:$0xff]
        %v1202 = vstv %s1199
        %v1203 = vmul.f32 %v1200, %v1202
        %v1204 = vmul.f32 %v1201, %v1202
        %1207 = vrot.lane.b32.xlu0 %v1203, 127
        %v1208 = vpop.permute.xlu0 %1207
        %1209 = vrot.lane.b32.xlu0 %v1204, 127
        %v1210 = vpop.permute.xlu0 %1209
        %v1213 = vadd.f32 %v1197, %v1208
        %v1214 = vadd.f32 %v1198, %v1210
        %s1215 = sld [smem:[#allocation3 + $0x23]]
        %v1216 = vld [vmem:[%s509 + $0x1] sm:$0xff]
        %v1217 = vld [vmem:[%s509 + $0x9] sm:$0xff]
        %v1218 = vstv %s1215
        %v1219 = vmul.f32 %v1216, %v1218
        %v1220 = vmul.f32 %v1217, %v1218
        %1223 = vrot.lane.b32.xlu0 %v1219, 127
        %v1224 = vpop.permute.xlu0 %1223
        %1225 = vrot.lane.b32.xlu0 %v1220, 127
        %v1226 = vpop.permute.xlu0 %1225
        %v1229 = vadd.f32 %v1213, %v1224
        %v1230 = vadd.f32 %v1214, %v1226
        %1233 = vrot.lane.b32.xlu0 %v1229, 127
        %v1234 = vpop.permute.xlu0 %1233
        %1235 = vrot.lane.b32.xlu0 %v1230, 127
        %v1236 = vpop.permute.xlu0 %1235
        %s1239 = scalar_lea.vmem %s177, 16
        %1240 = vst.msk [vmem:[%s1239] sm:$0xff] %vm892, %v1234
        %1241 = vst.msk [vmem:[%s1239 + $0x8] sm:$0xff] %vm892, %v1236
        %s1242 = sld [smem:[#allocation3]]
        %v1243 = vstv %s1242
        %v1244 = vmul.f32 %v583, %v1243
        %v1245 = vmul.f32 %v584, %v1243
        %v1246 = vadd.f32 %v1244, 0.0
        %v1247 = vadd.f32 %v1245, 0.0
        %s1248 = sld [smem:[#allocation3 + $0x9]]
        %v1249 = vstv %s1248
        %v1250 = vmul.f32 %v592, %v1249
        %v1251 = vmul.f32 %v593, %v1249
        %v1252 = vadd.f32 %v1246, %v1250
        %v1253 = vadd.f32 %v1247, %v1251
        %s1254 = sld [smem:[#allocation3 + $0x12]]
        %v1255 = vstv %s1254
        %v1256 = vmul.f32 %v601, %v1255
        %v1257 = vmul.f32 %v602, %v1255
        %v1258 = vadd.f32 %v1252, %v1256
        %v1259 = vadd.f32 %v1253, %v1257
        %s1260 = sld [smem:[#allocation3 + $0x1b]]
        %v1261 = vstv %s1260
        %v1262 = vmul.f32 %v610, %v1261
        %v1263 = vmul.f32 %v611, %v1261
        %v1264 = vadd.f32 %v1258, %v1262
        %v1265 = vadd.f32 %v1259, %v1263
        %s1266 = sld [smem:[#allocation3 + $0x1]]
        %v1267 = vstv %s1266
        %v1268 = vmul.f32 %v618, %v1267
        %v1269 = vmul.f32 %v619, %v1267
        %1272 = vrot.lane.b32.xlu0 %v1268, 127
        %v1273 = vpop.permute.xlu0 %1272
        %1274 = vrot.lane.b32.xlu0 %v1269, 127
        %v1275 = vpop.permute.xlu0 %1274
        %v1278 = vadd.f32 %v1264, %v1273
        %v1279 = vadd.f32 %v1265, %v1275
        %s1280 = sld [smem:[#allocation3 + $0xa]]
        %v1281 = vstv %s1280
        %v1282 = vmul.f32 %v635, %v1281
        %v1283 = vmul.f32 %v636, %v1281
        %1286 = vrot.lane.b32.xlu0 %v1282, 127
        %v1287 = vpop.permute.xlu0 %1286
        %1288 = vrot.lane.b32.xlu0 %v1283, 127
        %v1289 = vpop.permute.xlu0 %1288
        %v1292 = vadd.f32 %v1278, %v1287
        %v1293 = vadd.f32 %v1279, %v1289
        %s1294 = sld [smem:[#allocation3 + $0x13]]
        %v1295 = vstv %s1294
        %v1296 = vmul.f32 %v652, %v1295
        %v1297 = vmul.f32 %v653, %v1295
        %1300 = vrot.lane.b32.xlu0 %v1296, 127
        %v1301 = vpop.permute.xlu0 %1300
        %1302 = vrot.lane.b32.xlu0 %v1297, 127
        %v1303 = vpop.permute.xlu0 %1302
        %v1306 = vadd.f32 %v1292, %v1301
        %v1307 = vadd.f32 %v1293, %v1303
        %s1308 = sld [smem:[#allocation3 + $0x1c]]
        %v1309 = vstv %s1308
        %v1310 = vmul.f32 %v669, %v1309
        %v1311 = vmul.f32 %v670, %v1309
        %1314 = vrot.lane.b32.xlu0 %v1310, 127
        %v1315 = vpop.permute.xlu0 %1314
        %1316 = vrot.lane.b32.xlu0 %v1311, 127
        %v1317 = vpop.permute.xlu0 %1316
        %v1320 = vadd.f32 %v1306, %v1315
        %v1321 = vadd.f32 %v1307, %v1317
        %s1322 = sld [smem:[#allocation3 + $0x2]]
        %v1323 = vstv %s1322
        %v1324 = vmul.f32 %v583, %v1323
        %v1325 = vmul.f32 %v584, %v1323
        %1328 = vrot.lane.b32.xlu0 %v1324, 127
        %v1329 = vpop.permute.xlu0 %1328
        %1330 = vrot.lane.b32.xlu0 %v1325, 127
        %v1331 = vpop.permute.xlu0 %1330
        %v1334 = vadd.f32 %v1320, %v1329
        %v1335 = vadd.f32 %v1321, %v1331
        %s1336 = sld [smem:[#allocation3 + $0xb]]
        %v1337 = vstv %s1336
        %v1338 = vmul.f32 %v592, %v1337
        %v1339 = vmul.f32 %v593, %v1337
        %1342 = vrot.lane.b32.xlu0 %v1338, 127
        %v1343 = vpop.permute.xlu0 %1342
        %1344 = vrot.lane.b32.xlu0 %v1339, 127
        %v1345 = vpop.permute.xlu0 %1344
        %v1348 = vadd.f32 %v1334, %v1343
        %v1349 = vadd.f32 %v1335, %v1345
        %s1350 = sld [smem:[#allocation3 + $0x14]]
        %v1351 = vstv %s1350
        %v1352 = vmul.f32 %v601, %v1351
        %v1353 = vmul.f32 %v602, %v1351
        %1356 = vrot.lane.b32.xlu0 %v1352, 127
        %v1357 = vpop.permute.xlu0 %1356
        %1358 = vrot.lane.b32.xlu0 %v1353, 127
        %v1359 = vpop.permute.xlu0 %1358
        %v1362 = vadd.f32 %v1348, %v1357
        %v1363 = vadd.f32 %v1349, %v1359
        %s1364 = sld [smem:[#allocation3 + $0x1d]]
        %v1365 = vstv %s1364
        %v1366 = vmul.f32 %v610, %v1365
        %v1367 = vmul.f32 %v611, %v1365
        %1370 = vrot.lane.b32.xlu0 %v1366, 127
        %v1371 = vpop.permute.xlu0 %1370
        %1372 = vrot.lane.b32.xlu0 %v1367, 127
        %v1373 = vpop.permute.xlu0 %1372
        %v1376 = vadd.f32 %v1362, %v1371
        %v1377 = vadd.f32 %v1363, %v1373
        %s1378 = sld [smem:[#allocation3 + $0x3]]
        %v1379 = vstv %s1378
        %v1380 = vmul.f32 %v741, %v1379
        %v1381 = vmul.f32 %v742, %v1379
        %v1382 = vadd.f32 %v1376, %v1380
        %v1383 = vadd.f32 %v1377, %v1381
        %s1384 = sld [smem:[#allocation3 + $0xc]]
        %v1385 = vstv %s1384
        %v1386 = vmul.f32 %v749, %v1385
        %v1387 = vmul.f32 %v750, %v1385
        %v1388 = vadd.f32 %v1382, %v1386
        %v1389 = vadd.f32 %v1383, %v1387
        %s1390 = sld [smem:[#allocation3 + $0x15]]
        %v1391 = vstv %s1390
        %v1392 = vmul.f32 %v757, %v1391
        %v1393 = vmul.f32 %v758, %v1391
        %v1394 = vadd.f32 %v1388, %v1392
        %v1395 = vadd.f32 %v1389, %v1393
        %s1396 = sld [smem:[#allocation3 + $0x1e]]
        %v1397 = vstv %s1396
        %v1398 = vmul.f32 %v765, %v1397
        %v1399 = vmul.f32 %v766, %v1397
        %v1400 = vadd.f32 %v1394, %v1398
        %v1401 = vadd.f32 %v1395, %v1399
        %s1402 = sld [smem:[#allocation3 + $0x4]]
        %v1403 = vstv %s1402
        %v1404 = vmul.f32 %v773, %v1403
        %v1405 = vmul.f32 %v774, %v1403
        %1408 = vrot.lane.b32.xlu0 %v1404, 127
        %v1409 = vpop.permute.xlu0 %1408
        %1410 = vrot.lane.b32.xlu0 %v1405, 127
        %v1411 = vpop.permute.xlu0 %1410
        %v1414 = vadd.f32 %v1400, %v1409
        %v1415 = vadd.f32 %v1401, %v1411
        %s1416 = sld [smem:[#allocation3 + $0xd]]
        %v1417 = vstv %s1416
        %v1418 = vmul.f32 %v789, %v1417
        %v1419 = vmul.f32 %v790, %v1417
        %1422 = vrot.lane.b32.xlu0 %v1418, 127
        %v1423 = vpop.permute.xlu0 %1422
        %1424 = vrot.lane.b32.xlu0 %v1419, 127
        %v1425 = vpop.permute.xlu0 %1424
        %v1428 = vadd.f32 %v1414, %v1423
        %v1429 = vadd.f32 %v1415, %v1425
        %s1430 = sld [smem:[#allocation3 + $0x16]]
        %v1431 = vstv %s1430
        %v1432 = vmul.f32 %v805, %v1431
        %v1433 = vmul.f32 %v806, %v1431
        %1436 = vrot.lane.b32.xlu0 %v1432, 127
        %v1437 = vpop.permute.xlu0 %1436
        %1438 = vrot.lane.b32.xlu0 %v1433, 127
        %v1439 = vpop.permute.xlu0 %1438
        %v1442 = vadd.f32 %v1428, %v1437
        %v1443 = vadd.f32 %v1429, %v1439
        %s1444 = sld [smem:[#allocation3 + $0x1f]]
        %v1445 = vstv %s1444
        %v1446 = vmul.f32 %v821, %v1445
        %v1447 = vmul.f32 %v822, %v1445
        %1450 = vrot.lane.b32.xlu0 %v1446, 127
        %v1451 = vpop.permute.xlu0 %1450
        %1452 = vrot.lane.b32.xlu0 %v1447, 127
        %v1453 = vpop.permute.xlu0 %1452
        %v1456 = vadd.f32 %v1442, %v1451
        %v1457 = vadd.f32 %v1443, %v1453
        %s1458 = sld [smem:[#allocation3 + $0x5]]
        %v1459 = vstv %s1458
        %v1460 = vmul.f32 %v741, %v1459
        %v1461 = vmul.f32 %v742, %v1459
        %1464 = vrot.lane.b32.xlu0 %v1460, 127
        %v1465 = vpop.permute.xlu0 %1464
        %1466 = vrot.lane.b32.xlu0 %v1461, 127
        %v1467 = vpop.permute.xlu0 %1466
        %v1470 = vadd.f32 %v1456, %v1465
        %v1471 = vadd.f32 %v1457, %v1467
        %s1472 = sld [smem:[#allocation3 + $0xe]]
        %v1473 = vstv %s1472
        %v1474 = vmul.f32 %v749, %v1473
        %v1475 = vmul.f32 %v750, %v1473
        %1478 = vrot.lane.b32.xlu0 %v1474, 127
        %v1479 = vpop.permute.xlu0 %1478
        %1480 = vrot.lane.b32.xlu0 %v1475, 127
        %v1481 = vpop.permute.xlu0 %1480
        %v1484 = vadd.f32 %v1470, %v1479
        %v1485 = vadd.f32 %v1471, %v1481
        %s1486 = sld [smem:[#allocation3 + $0x17]]
        %v1487 = vstv %s1486
        %v1488 = vmul.f32 %v757, %v1487
        %v1489 = vmul.f32 %v758, %v1487
        %1492 = vrot.lane.b32.xlu0 %v1488, 127
        %v1493 = vpop.permute.xlu0 %1492
        %1494 = vrot.lane.b32.xlu0 %v1489, 127
        %v1495 = vpop.permute.xlu0 %1494
        %v1498 = vadd.f32 %v1484, %v1493
        %v1499 = vadd.f32 %v1485, %v1495
        %s1500 = sld [smem:[#allocation3 + $0x20]]
        %v1501 = vstv %s1500
        %v1502 = vmul.f32 %v765, %v1501
        %v1503 = vmul.f32 %v766, %v1501
        %1506 = vrot.lane.b32.xlu0 %v1502, 127
        %v1507 = vpop.permute.xlu0 %1506
        %1508 = vrot.lane.b32.xlu0 %v1503, 127
        %v1509 = vpop.permute.xlu0 %1508
        %v1512 = vadd.f32 %v1498, %v1507
        %v1513 = vadd.f32 %v1499, %v1509
        %s1514 = sld [smem:[#allocation3 + $0x6]]
        %v1515 = vld [vmem:[%s582 + $0x2] sm:$0xff]
        %v1516 = vld [vmem:[%s582 + $0xa] sm:$0xff]
        %v1517 = vstv %s1514
        %v1518 = vmul.f32 %v1515, %v1517
        %v1519 = vmul.f32 %v1516, %v1517
        %v1520 = vadd.f32 %v1512, %v1518
        %v1521 = vadd.f32 %v1513, %v1519
        %s1522 = sld [smem:[#allocation3 + $0xf]]
        %v1523 = vld [vmem:[%s591 + $0x2] sm:$0xff]
        %v1524 = vld [vmem:[%s591 + $0xa] sm:$0xff]
        %v1525 = vstv %s1522
        %v1526 = vmul.f32 %v1523, %v1525
        %v1527 = vmul.f32 %v1524, %v1525
        %v1528 = vadd.f32 %v1520, %v1526
        %v1529 = vadd.f32 %v1521, %v1527
        %s1530 = sld [smem:[#allocation3 + $0x18]]
        %v1531 = vld [vmem:[%s600 + $0x2] sm:$0xff]
        %v1532 = vld [vmem:[%s600 + $0xa] sm:$0xff]
        %v1533 = vstv %s1530
        %v1534 = vmul.f32 %v1531, %v1533
        %v1535 = vmul.f32 %v1532, %v1533
        %v1536 = vadd.f32 %v1528, %v1534
        %v1537 = vadd.f32 %v1529, %v1535
        %s1538 = sld [smem:[#allocation3 + $0x21]]
        %v1539 = vld [vmem:[%s609 + $0x2] sm:$0xff]
        %v1540 = vld [vmem:[%s609 + $0xa] sm:$0xff]
        %v1541 = vstv %s1538
        %v1542 = vmul.f32 %v1539, %v1541
        %v1543 = vmul.f32 %v1540, %v1541
        %v1544 = vadd.f32 %v1536, %v1542
        %v1545 = vadd.f32 %v1537, %v1543
        %s1546 = sld [smem:[#allocation3 + $0x7]]
        %v1547 = vld [vmem:[#allocation2 + $0x2] sm:$0xff]
        %v1548 = vld [vmem:[#allocation2 + $0xa] sm:$0xff]
        %v1549 = vstv %s1546
        %v1550 = vmul.f32 %v1547, %v1549
        %v1551 = vmul.f32 %v1548, %v1549
        %1554 = vrot.lane.b32.xlu0 %v1550, 127
        %v1555 = vpop.permute.xlu0 %1554
        %1556 = vrot.lane.b32.xlu0 %v1551, 127
        %v1557 = vpop.permute.xlu0 %1556
        %v1560 = vadd.f32 %v1544, %v1555
        %v1561 = vadd.f32 %v1545, %v1557
        %s1562 = sld [smem:[#allocation3 + $0x10]]
        %v1563 = vld [vmem:[%s634 + $0x2] sm:$0xff]
        %v1564 = vld [vmem:[%s634 + $0xa] sm:$0xff]
        %v1565 = vstv %s1562
        %v1566 = vmul.f32 %v1563, %v1565
        %v1567 = vmul.f32 %v1564, %v1565
        %1570 = vrot.lane.b32.xlu0 %v1566, 127
        %v1571 = vpop.permute.xlu0 %1570
        %1572 = vrot.lane.b32.xlu0 %v1567, 127
        %v1573 = vpop.permute.xlu0 %1572
        %v1576 = vadd.f32 %v1560, %v1571
        %v1577 = vadd.f32 %v1561, %v1573
        %s1578 = sld [smem:[#allocation3 + $0x19]]
        %v1579 = vld [vmem:[%s651 + $0x2] sm:$0xff]
        %v1580 = vld [vmem:[%s651 + $0xa] sm:$0xff]
        %v1581 = vstv %s1578
        %v1582 = vmul.f32 %v1579, %v1581
        %v1583 = vmul.f32 %v1580, %v1581
        %1586 = vrot.lane.b32.xlu0 %v1582, 127
        %v1587 = vpop.permute.xlu0 %1586
        %1588 = vrot.lane.b32.xlu0 %v1583, 127
        %v1589 = vpop.permute.xlu0 %1588
        %v1592 = vadd.f32 %v1576, %v1587
        %v1593 = vadd.f32 %v1577, %v1589
        %s1594 = sld [smem:[#allocation3 + $0x22]]
        %v1595 = vld [vmem:[%s668 + $0x2] sm:$0xff]
        %v1596 = vld [vmem:[%s668 + $0xa] sm:$0xff]
        %v1597 = vstv %s1594
        %v1598 = vmul.f32 %v1595, %v1597
        %v1599 = vmul.f32 %v1596, %v1597
        %1602 = vrot.lane.b32.xlu0 %v1598, 127
        %v1603 = vpop.permute.xlu0 %1602
        %1604 = vrot.lane.b32.xlu0 %v1599, 127
        %v1605 = vpop.permute.xlu0 %1604
        %v1608 = vadd.f32 %v1592, %v1603
        %v1609 = vadd.f32 %v1593, %v1605
        %s1610 = sld [smem:[#allocation3 + $0x8]]
        %v1611 = vstv %s1610
        %v1612 = vmul.f32 %v1515, %v1611
        %v1613 = vmul.f32 %v1516, %v1611
        %1616 = vrot.lane.b32.xlu0 %v1612, 127
        %v1617 = vpop.permute.xlu0 %1616
        %1618 = vrot.lane.b32.xlu0 %v1613, 127
        %v1619 = vpop.permute.xlu0 %1618
        %v1622 = vadd.f32 %v1608, %v1617
        %v1623 = vadd.f32 %v1609, %v1619
        %s1624 = sld [smem:[#allocation3 + $0x11]]
        %v1625 = vstv %s1624
        %v1626 = vmul.f32 %v1523, %v1625
        %v1627 = vmul.f32 %v1524, %v1625
        %1630 = vrot.lane.b32.xlu0 %v1626, 127
        %v1631 = vpop.permute.xlu0 %1630
        %1632 = vrot.lane.b32.xlu0 %v1627, 127
        %v1633 = vpop.permute.xlu0 %1632
        %v1636 = vadd.f32 %v1622, %v1631
        %v1637 = vadd.f32 %v1623, %v1633
        %s1638 = sld [smem:[#allocation3 + $0x1a]]
        %v1639 = vstv %s1638
        %v1640 = vmul.f32 %v1531, %v1639
        %v1641 = vmul.f32 %v1532, %v1639
        %1644 = vrot.lane.b32.xlu0 %v1640, 127
        %v1645 = vpop.permute.xlu0 %1644
        %1646 = vrot.lane.b32.xlu0 %v1641, 127
        %v1647 = vpop.permute.xlu0 %1646
        %v1650 = vadd.f32 %v1636, %v1645
        %v1651 = vadd.f32 %v1637, %v1647
        %s1652 = sld [smem:[#allocation3 + $0x23]]
        %v1653 = vstv %s1652
        %v1654 = vmul.f32 %v1539, %v1653
        %v1655 = vmul.f32 %v1540, %v1653
        %1658 = vrot.lane.b32.xlu0 %v1654, 127
        %v1659 = vpop.permute.xlu0 %1658
        %1660 = vrot.lane.b32.xlu0 %v1655, 127
        %v1661 = vpop.permute.xlu0 %1660
        %v1664 = vadd.f32 %v1650, %v1659
        %v1665 = vadd.f32 %v1651, %v1661
        %s1666 = scalar_lea.vmem %s177, 32
        %1667 = vst.msk [vmem:[%s1666] sm:$0xff] %vm892, %v1664
        %1668 = vst.msk [vmem:[%s1666 + $0x8] sm:$0xff] %vm892, %v1665
        %s1669 = sld [smem:[#allocation3]]
        %v1670 = vstv %s1669
        %v1671 = vmul.f32 %v618, %v1670
        %v1672 = vmul.f32 %v619, %v1670
        %v1673 = vadd.f32 %v1671, 0.0
        %v1674 = vadd.f32 %v1672, 0.0
        %s1675 = sld [smem:[#allocation3 + $0x9]]
        %v1676 = vstv %s1675
        %v1677 = vmul.f32 %v635, %v1676
        %v1678 = vmul.f32 %v636, %v1676
        %v1679 = vadd.f32 %v1673, %v1677
        %v1680 = vadd.f32 %v1674, %v1678
        %s1681 = sld [smem:[#allocation3 + $0x12]]
        %v1682 = vstv %s1681
        %v1683 = vmul.f32 %v652, %v1682
        %v1684 = vmul.f32 %v653, %v1682
        %v1685 = vadd.f32 %v1679, %v1683
        %v1686 = vadd.f32 %v1680, %v1684
        %s1687 = sld [smem:[#allocation3 + $0x1b]]
        %v1688 = vstv %s1687
        %v1689 = vmul.f32 %v669, %v1688
        %v1690 = vmul.f32 %v670, %v1688
        %v1691 = vadd.f32 %v1685, %v1689
        %v1692 = vadd.f32 %v1686, %v1690
        %s1693 = sld [smem:[#allocation3 + $0x1]]
        %v1694 = vstv %s1693
        %v1695 = vmul.f32 %v583, %v1694
        %v1696 = vmul.f32 %v584, %v1694
        %v1697 = vadd.f32 %v1691, %v1695
        %v1698 = vadd.f32 %v1692, %v1696
        %s1699 = sld [smem:[#allocation3 + $0xa]]
        %v1700 = vstv %s1699
        %v1701 = vmul.f32 %v592, %v1700
        %v1702 = vmul.f32 %v593, %v1700
        %v1703 = vadd.f32 %v1697, %v1701
        %v1704 = vadd.f32 %v1698, %v1702
        %s1705 = sld [smem:[#allocation3 + $0x13]]
        %v1706 = vstv %s1705
        %v1707 = vmul.f32 %v601, %v1706
        %v1708 = vmul.f32 %v602, %v1706
        %v1709 = vadd.f32 %v1703, %v1707
        %v1710 = vadd.f32 %v1704, %v1708
        %s1711 = sld [smem:[#allocation3 + $0x1c]]
        %v1712 = vstv %s1711
        %v1713 = vmul.f32 %v610, %v1712
        %v1714 = vmul.f32 %v611, %v1712
        %v1715 = vadd.f32 %v1709, %v1713
        %v1716 = vadd.f32 %v1710, %v1714
        %s1717 = sld [smem:[#allocation3 + $0x2]]
        %v1718 = vstv %s1717
        %v1719 = vmul.f32 %v1056, %v1718
        %v1720 = vmul.f32 %v1057, %v1718
        %1723 = vrot.lane.b32.xlu0 %v1719, 127
        %v1724 = vpop.permute.xlu0 %1723
        %1725 = vrot.lane.b32.xlu0 %v1720, 127
        %v1726 = vpop.permute.xlu0 %1725
        %v1729 = vadd.f32 %v1715, %v1724
        %v1730 = vadd.f32 %v1716, %v1726
        %s1731 = sld [smem:[#allocation3 + $0xb]]
        %v1732 = vstv %s1731
        %v1733 = vmul.f32 %v1072, %v1732
        %v1734 = vmul.f32 %v1073, %v1732
        %1737 = vrot.lane.b32.xlu0 %v1733, 127
        %v1738 = vpop.permute.xlu0 %1737
        %1739 = vrot.lane.b32.xlu0 %v1734, 127
        %v1740 = vpop.permute.xlu0 %1739
        %v1743 = vadd.f32 %v1729, %v1738
        %v1744 = vadd.f32 %v1730, %v1740
        %s1745 = sld [smem:[#allocation3 + $0x14]]
        %v1746 = vstv %s1745
        %v1747 = vmul.f32 %v1088, %v1746
        %v1748 = vmul.f32 %v1089, %v1746
        %1751 = vrot.lane.b32.xlu0 %v1747, 127
        %v1752 = vpop.permute.xlu0 %1751
        %1753 = vrot.lane.b32.xlu0 %v1748, 127
        %v1754 = vpop.permute.xlu0 %1753
        %v1757 = vadd.f32 %v1743, %v1752
        %v1758 = vadd.f32 %v1744, %v1754
        %s1759 = sld [smem:[#allocation3 + $0x1d]]
        %v1760 = vstv %s1759
        %v1761 = vmul.f32 %v1104, %v1760
        %v1762 = vmul.f32 %v1105, %v1760
        %1765 = vrot.lane.b32.xlu0 %v1761, 127
        %v1766 = vpop.permute.xlu0 %1765
        %1767 = vrot.lane.b32.xlu0 %v1762, 127
        %v1768 = vpop.permute.xlu0 %1767
        %v1771 = vadd.f32 %v1757, %v1766
        %v1772 = vadd.f32 %v1758, %v1768
        %s1773 = sld [smem:[#allocation3 + $0x3]]
        %v1774 = vstv %s1773
        %v1775 = vmul.f32 %v773, %v1774
        %v1776 = vmul.f32 %v774, %v1774
        %v1777 = vadd.f32 %v1771, %v1775
        %v1778 = vadd.f32 %v1772, %v1776
        %s1779 = sld [smem:[#allocation3 + $0xc]]
        %v1780 = vstv %s1779
        %v1781 = vmul.f32 %v789, %v1780
        %v1782 = vmul.f32 %v790, %v1780
        %v1783 = vadd.f32 %v1777, %v1781
        %v1784 = vadd.f32 %v1778, %v1782
        %s1785 = sld [smem:[#allocation3 + $0x15]]
        %v1786 = vstv %s1785
        %v1787 = vmul.f32 %v805, %v1786
        %v1788 = vmul.f32 %v806, %v1786
        %v1789 = vadd.f32 %v1783, %v1787
        %v1790 = vadd.f32 %v1784, %v1788
        %s1791 = sld [smem:[#allocation3 + $0x1e]]
        %v1792 = vstv %s1791
        %v1793 = vmul.f32 %v821, %v1792
        %v1794 = vmul.f32 %v822, %v1792
        %v1795 = vadd.f32 %v1789, %v1793
        %v1796 = vadd.f32 %v1790, %v1794
        %s1797 = sld [smem:[#allocation3 + $0x4]]
        %v1798 = vstv %s1797
        %v1799 = vmul.f32 %v741, %v1798
        %v1800 = vmul.f32 %v742, %v1798
        %v1801 = vadd.f32 %v1795, %v1799
        %v1802 = vadd.f32 %v1796, %v1800
        %s1803 = sld [smem:[#allocation3 + $0xd]]
        %v1804 = vstv %s1803
        %v1805 = vmul.f32 %v749, %v1804
        %v1806 = vmul.f32 %v750, %v1804
        %v1807 = vadd.f32 %v1801, %v1805
        %v1808 = vadd.f32 %v1802, %v1806
        %s1809 = sld [smem:[#allocation3 + $0x16]]
        %v1810 = vstv %s1809
        %v1811 = vmul.f32 %v757, %v1810
        %v1812 = vmul.f32 %v758, %v1810
        %v1813 = vadd.f32 %v1807, %v1811
        %v1814 = vadd.f32 %v1808, %v1812
        %s1815 = sld [smem:[#allocation3 + $0x1f]]
        %v1816 = vstv %s1815
        %v1817 = vmul.f32 %v765, %v1816
        %v1818 = vmul.f32 %v766, %v1816
        %v1819 = vadd.f32 %v1813, %v1817
        %v1820 = vadd.f32 %v1814, %v1818
        %s1821 = sld [smem:[#allocation3 + $0x5]]
        %v1822 = vstv %s1821
        %v1823 = vmul.f32 %v1168, %v1822
        %v1824 = vmul.f32 %v1169, %v1822
        %1827 = vrot.lane.b32.xlu0 %v1823, 127
        %v1828 = vpop.permute.xlu0 %1827
        %1829 = vrot.lane.b32.xlu0 %v1824, 127
        %v1830 = vpop.permute.xlu0 %1829
        %v1833 = vadd.f32 %v1819, %v1828
        %v1834 = vadd.f32 %v1820, %v1830
        %s1835 = sld [smem:[#allocation3 + $0xe]]
        %v1836 = vstv %s1835
        %v1837 = vmul.f32 %v1184, %v1836
        %v1838 = vmul.f32 %v1185, %v1836
        %1841 = vrot.lane.b32.xlu0 %v1837, 127
        %v1842 = vpop.permute.xlu0 %1841
        %1843 = vrot.lane.b32.xlu0 %v1838, 127
        %v1844 = vpop.permute.xlu0 %1843
        %v1847 = vadd.f32 %v1833, %v1842
        %v1848 = vadd.f32 %v1834, %v1844
        %s1849 = sld [smem:[#allocation3 + $0x17]]
        %v1850 = vstv %s1849
        %v1851 = vmul.f32 %v1200, %v1850
        %v1852 = vmul.f32 %v1201, %v1850
        %1855 = vrot.lane.b32.xlu0 %v1851, 127
        %v1856 = vpop.permute.xlu0 %1855
        %1857 = vrot.lane.b32.xlu0 %v1852, 127
        %v1858 = vpop.permute.xlu0 %1857
        %v1861 = vadd.f32 %v1847, %v1856
        %v1862 = vadd.f32 %v1848, %v1858
        %s1863 = sld [smem:[#allocation3 + $0x20]]
        %v1864 = vstv %s1863
        %v1865 = vmul.f32 %v1216, %v1864
        %v1866 = vmul.f32 %v1217, %v1864
        %1869 = vrot.lane.b32.xlu0 %v1865, 127
        %v1870 = vpop.permute.xlu0 %1869
        %1871 = vrot.lane.b32.xlu0 %v1866, 127
        %v1872 = vpop.permute.xlu0 %1871
        %v1875 = vadd.f32 %v1861, %v1870
        %v1876 = vadd.f32 %v1862, %v1872
        %s1877 = sld [smem:[#allocation3 + $0x6]]
        %v1878 = vstv %s1877
        %v1879 = vmul.f32 %v1547, %v1878
        %v1880 = vmul.f32 %v1548, %v1878
        %v1881 = vadd.f32 %v1875, %v1879
        %v1882 = vadd.f32 %v1876, %v1880
        %s1883 = sld [smem:[#allocation3 + $0xf]]
        %v1884 = vstv %s1883
        %v1885 = vmul.f32 %v1563, %v1884
        %v1886 = vmul.f32 %v1564, %v1884
        %v1887 = vadd.f32 %v1881, %v1885
        %v1888 = vadd.f32 %v1882, %v1886
        %s1889 = sld [smem:[#allocation3 + $0x18]]
        %v1890 = vstv %s1889
        %v1891 = vmul.f32 %v1579, %v1890
        %v1892 = vmul.f32 %v1580, %v1890
        %v1893 = vadd.f32 %v1887, %v1891
        %v1894 = vadd.f32 %v1888, %v1892
        %s1895 = sld [smem:[#allocation3 + $0x21]]
        %v1896 = vstv %s1895
        %v1897 = vmul.f32 %v1595, %v1896
        %v1898 = vmul.f32 %v1596, %v1896
        %v1899 = vadd.f32 %v1893, %v1897
        %v1900 = vadd.f32 %v1894, %v1898
        %s1901 = sld [smem:[#allocation3 + $0x7]]
        %v1902 = vstv %s1901
        %v1903 = vmul.f32 %v1515, %v1902
        %v1904 = vmul.f32 %v1516, %v1902
        %v1905 = vadd.f32 %v1899, %v1903
        %v1906 = vadd.f32 %v1900, %v1904
        %s1907 = sld [smem:[#allocation3 + $0x10]]
        %v1908 = vstv %s1907
        %v1909 = vmul.f32 %v1523, %v1908
        %v1910 = vmul.f32 %v1524, %v1908
        %v1911 = vadd.f32 %v1905, %v1909
        %v1912 = vadd.f32 %v1906, %v1910
        %s1913 = sld [smem:[#allocation3 + $0x19]]
        %v1914 = vstv %s1913
        %v1915 = vmul.f32 %v1531, %v1914
        %v1916 = vmul.f32 %v1532, %v1914
        %v1917 = vadd.f32 %v1911, %v1915
        %v1918 = vadd.f32 %v1912, %v1916
        %s1919 = sld [smem:[#allocation3 + $0x22]]
        %v1920 = vstv %s1919
        %v1921 = vmul.f32 %v1539, %v1920
        %v1922 = vmul.f32 %v1540, %v1920
        %v1923 = vadd.f32 %v1917, %v1921
        %v1924 = vadd.f32 %v1918, %v1922
        %s1925 = sld [smem:[#allocation3 + $0x8]]
        %v1926 = vld [vmem:[#allocation2 + $0x2] sm:$0xff]
        %v1927 = vld [vmem:[#allocation2 + $0xa] sm:$0xff]
        %v1928 = vstv %s1925
        %v1929 = vmul.f32 %v1926, %v1928
        %v1930 = vmul.f32 %v1927, %v1928
        %1933 = vrot.lane.b32.xlu0 %v1929, 127
        %v1934 = vpop.permute.xlu0 %1933
        %1935 = vrot.lane.b32.xlu0 %v1930, 127
        %v1936 = vpop.permute.xlu0 %1935
        %v1939 = vadd.f32 %v1923, %v1934
        %v1940 = vadd.f32 %v1924, %v1936
        %s1941 = sld [smem:[#allocation3 + $0x11]]
        %v1942 = vld [vmem:[%s634 + $0x2] sm:$0xff]
        %v1943 = vld [vmem:[%s634 + $0xa] sm:$0xff]
        %v1944 = vstv %s1941
        %v1945 = vmul.f32 %v1942, %v1944
        %v1946 = vmul.f32 %v1943, %v1944
        %1949 = vrot.lane.b32.xlu0 %v1945, 127
        %v1950 = vpop.permute.xlu0 %1949
        %1951 = vrot.lane.b32.xlu0 %v1946, 127
        %v1952 = vpop.permute.xlu0 %1951
        %v1955 = vadd.f32 %v1939, %v1950
        %v1956 = vadd.f32 %v1940, %v1952
        %s1957 = sld [smem:[#allocation3 + $0x1a]]
        %v1958 = vld [vmem:[%s651 + $0x2] sm:$0xff]
        %v1959 = vld [vmem:[%s651 + $0xa] sm:$0xff]
        %v1960 = vstv %s1957
        %v1961 = vmul.f32 %v1958, %v1960
        %v1962 = vmul.f32 %v1959, %v1960
        %1965 = vrot.lane.b32.xlu0 %v1961, 127
        %v1966 = vpop.permute.xlu0 %1965
        %1967 = vrot.lane.b32.xlu0 %v1962, 127
        %v1968 = vpop.permute.xlu0 %1967
        %v1971 = vadd.f32 %v1955, %v1966
        %v1972 = vadd.f32 %v1956, %v1968
        %s1973 = sld [smem:[#allocation3 + $0x23]]
        %v1974 = vld [vmem:[%s668 + $0x2] sm:$0xff]
        %v1975 = vld [vmem:[%s668 + $0xa] sm:$0xff]
        %v1976 = vstv %s1973
        %v1977 = vmul.f32 %v1974, %v1976
        %v1978 = vmul.f32 %v1975, %v1976
        %1981 = vrot.lane.b32.xlu0 %v1977, 127
        %v1982 = vpop.permute.xlu0 %1981
        %1983 = vrot.lane.b32.xlu0 %v1978, 127
        %v1984 = vpop.permute.xlu0 %1983
        %v1987 = vadd.f32 %v1971, %v1982
        %v1988 = vadd.f32 %v1972, %v1984
        %1991 = vrot.lane.b32.xlu0 %v1987, 127
        %v1992 = vpop.permute.xlu0 %1991
        %1993 = vrot.lane.b32.xlu0 %v1988, 127
        %v1994 = vpop.permute.xlu0 %1993
        %s1997 = scalar_lea.vmem %s177, 48
        %1998 = vst.msk [vmem:[%s1997] sm:$0xff] %vm892, %v1992
        %1999 = vst.msk [vmem:[%s1997 + $0x8] sm:$0xff] %vm892, %v1994
        %p2000 = scmp.lt.s32.totalorder %s17, 1
        %s2001 = scalar_select %p2000, %s17, 1
        %s2002 = smul.addr %s2001, 8
        %s2003 = smul.addr %s2002, 8
        %s2004 = scalar_lea.vmem %s2, %s2003
        // Predicated region
        $region37: #{restruct_forward.1} parent=27 // pred_check
          %p2005 = pneg %p82
        $region38: #{restruct_forward.1} parent=27 // pred_check_branch
          %2007 = sbr.rel (%p2005) target = $region40
        $region39: #{restruct_forward.1} parent=27 // pred_region
          _
        $region40: #{restruct_forward.1} parent=27 // pred_fallthru
          _
      $region28: #{restruct_forward.1} parent=5 // pred_fallthru
        _
      %p2008 = scmp.le.s32.totalorder 2, %s12
      // Predicated region
      $region41: #{restruct_forward.1} parent=5 // pred_check
        %p2009 = pneg %p2008
      $region42: #{restruct_forward.1} parent=5 // pred_check_branch
        %2011 = sbr.rel (%p2009) target = $region44
      $region43: #{restruct_forward.1} parent=5 // pred_region
        %s2012 = ssub.s32 %s12, 2
        // Predicated region
        $region45: #{restruct_forward.1} parent=43 // pred_check
          %p2013 = pneg %p88
        $region46: #{restruct_forward.1} parent=43 // pred_check_branch
          %2015 = sbr.rel (%p2013) target = $region48
        $region47: #{restruct_forward.1} parent=43 // pred_region
          %p2016 = scmp.lt.s32.totalorder %s18, 1
          %s2017 = scalar_select %p2016, %s18, 1
          %s2018 = smul.addr %s2017, 8
          %s2019 = smul.addr %s2018, 8
          %s2020 = scalar_lea.vmem %s2, %s2019
        $region48: #{restruct_forward.1} parent=43 // pred_fallthru
          _
      $region44: #{restruct_forward.1} parent=5 // pred_fallthru
        _
    $region6: #{restruct_forward.1} parent=1 // loop_footer
      %s16 = sadd.s32 1, %s12
    $region7: #{restruct_forward.1} parent=1 // loop_footer_branch
      %11 = sbr.rel target = $region3
    $region8: #{restruct_forward.1} parent=1 // loop_exit
      _
    %2021 = vsyncpa [#allocation4], 1
    %s2022 = scalar_lea.sflag [#allocation4], 1
    %2023 = vsyncpa %s2022, 1
    %2024 = vsyncpa [#allocation5], 1
    %s2025 = scalar_lea.sflag [#allocation5], 1
    %2026 = vsyncpa %s2025, 1

</llo_original>
